<compile_context>
chip_gen: v5e
topology: v5e:2x2
jax: 0.10.0
libtpu: 0.0.40
codegen_flags: <defaults>
</compile_context>

<pallas_src>
import functools
import math

import jax
import jax.numpy as jnp
from jax.experimental import pallas as pl
from jax.experimental.pallas import tpu as pltpu

LANE = 128          # lane width (last dim of a vreg)
SUBLANE = 8         # sublane count (second-to-last dim of a vreg)
MXU_DTYPE = jnp.bfloat16   # matmul operand dtype (accumulation stays f32)
LN_EPS = 1e-5


def _round_up(x, m):
    return (x + m - 1) // m * m


# ----------------------------------------------------------------------------
# In-kernel building blocks
# ----------------------------------------------------------------------------
def _fc_layer(x, w, b, g, bt, n_out):
    """FClayer: y = LayerNorm(GELU(x @ W_t + b)) * gamma + beta.

    x: (M, Kpad); w: (Kpad, Npad) bf16; b/g/bt: (1, Npad) f32 (zero-padded).
    LayerNorm statistics are computed over the real `n_out` features only;
    zero-padded gamma/beta keep padded output lanes exactly 0.
    """
    n_pad = w.shape[1]
    h = jnp.dot(x.astype(MXU_DTYPE), w, preferred_element_type=jnp.float32) + b
    # exact (erf) GELU, same as torch.nn.GELU()
    h = 0.5 * h * (1.0 + jax.lax.erf(h * 0.7071067811865476))
    # LayerNorm (biased variance, eps=1e-5) over the real feature count
    if n_out == n_pad:
        mean = jnp.mean(h, axis=-1, keepdims=True)
        d = h - mean
        var = jnp.mean(d * d, axis=-1, keepdims=True)
    else:
        mask = (jax.lax.broadcasted_iota(jnp.int32, (1, n_pad), 1)
                < n_out).astype(jnp.float32)
        inv_n = 1.0 / n_out
        mean = jnp.sum(h * mask, axis=-1, keepdims=True) * inv_n
        d = (h - mean) * mask
        var = jnp.sum(d * d, axis=-1, keepdims=True) * inv_n
    h = (h - mean) * jax.lax.rsqrt(var + LN_EPS)
    return h * g + bt


def _ref_encoder_kernel(n_outs, x_ref, *refs):
    """Kernel A: fused reference-encoder MLP (chain of FClayers)."""
    out_ref = refs[-1]
    prm = refs[:-1]
    h = x_ref[...]
    for li, n_out in enumerate(n_outs):
        w, b, g, bt = prm[4 * li:4 * li + 4]
        h = _fc_layer(h, w[...], b[...], g[...], bt[...], n_out)
    out_ref[...] = h


def _bulk_path_kernel(enc_n_outs, dec_n_outs, n_labels, x_ref, zref_ref, *refs):
    """Kernel B: fused bulk path for one row-tile of `bulk`.

    bulk-encoder MLP -> Multiplier relu(z_bulk @ z_ref^T) -> PropDecoder MLP
    -> (z + mlp(z)) / rowsum.  Weights and z_ref are VMEM-resident across the
    grid (constant index_maps).
    """
    out_ref = refs[-1]
    prm = refs[:-1]
    idx = 0

    # ---- bulk encoder MLP ----
    h = x_ref[...]
    for n_out in enc_n_outs:
        w, b, g, bt = prm[idx:idx + 4]
        idx += 4
        h = _fc_layer(h, w[...], b[...], g[...], bt[...], n_out)

    # ---- Multiplier(activation='relu', use_deepest=True) ----
    # relu(z_bulk @ z_ref.T) expressed as a direct contraction of the last
    # dims (no explicit transpose feeding the MXU).
    z_prop = jax.lax.dot_general(
        h.astype(MXU_DTYPE), zref_ref[...].astype(MXU_DTYPE),
        dimension_numbers=(((1,), (1,)), ((), ())),
        preferred_element_type=jnp.float32)
    z_prop = jnp.maximum(z_prop, 0.0)

    # ---- PropDecoder MLP ----
    d = z_prop
    for n_out in dec_n_outs:
        w, b, g, bt = prm[idx:idx + 4]
        idx += 4
        d = _fc_layer(d, w[...], b[...], g[...], bt[...], n_out)

    # ---- residual + row-normalization over the real n_labels columns ----
    # (no epsilon, matching the PyTorch reference: z / sum(z, dim=1))
    s = z_prop + d
    n_pad = s.shape[-1]
    if n_labels != n_pad:
        mask = (jax.lax.broadcasted_iota(jnp.int32, (1, n_pad), 1)
                < n_labels).astype(jnp.float32)
        s = s * mask
    rowsum = jnp.sum(s, axis=-1, keepdims=True)
    out_ref[...] = s * pl.reciprocal(rowsum, approx=False)


# ----------------------------------------------------------------------------
# Parameter init (matches PropDeconv.init_params: kaiming_normal_ weights,
# bias filled with 0.01; LayerNorm gamma=1, beta=0)
# ----------------------------------------------------------------------------
def _init_fc_layer(key, n_in, n_out):
    std = math.sqrt(2.0 / n_in)  # kaiming_normal_, fan_in mode, gain=sqrt(2)
    w = jax.random.normal(key, (n_out, n_in), jnp.float32) * std
    return {
        "w_t": jnp.transpose(w),                       # (n_in, n_out)
        "b": jnp.full((n_out,), 0.01, jnp.float32),
        "gamma": jnp.ones((n_out,), jnp.float32),
        "beta": jnp.zeros((n_out,), jnp.float32),
    }


def _init_mlp(key, n_in, n_out, n_hidden):
    dims = list(zip([n_in] + n_hidden, n_hidden + [n_out]))
    keys = jax.random.split(key, len(dims))
    return [_init_fc_layer(k, i, o) for k, (i, o) in zip(keys, dims)]


def init_propdeconv_params(key, n_labels, n_genes, mlp_hidden, n_hidden):
    k_ref, k_bulk, k_dec = jax.random.split(key, 3)
    return {
        "reference_encoder": _init_mlp(k_ref, n_genes, n_hidden, mlp_hidden),
        "bulk_encoder": _init_mlp(k_bulk, n_genes, n_hidden, mlp_hidden),
        # PropDecoder always uses hidden=[128, 128]
        "prop_decoder_mlp": _init_mlp(k_dec, n_labels, n_labels, [128, 128]),
    }


# ----------------------------------------------------------------------------
# Padding / flattening of parameters into lane-dense kernel operands
# ----------------------------------------------------------------------------
def _pad_layer_params(layer):
    w_t = layer["w_t"]
    k_in, n_out = w_t.shape
    k_pad = _round_up(k_in, LANE)
    n_pad = _round_up(n_out, LANE)
    w_p = jnp.zeros((k_pad, n_pad), jnp.float32).at[:k_in, :n_out].set(w_t)
    b_p = jnp.zeros((1, n_pad), jnp.float32).at[0, :n_out].set(layer["b"])
    g_p = jnp.zeros((1, n_pad), jnp.float32).at[0, :n_out].set(layer["gamma"])
    bt_p = jnp.zeros((1, n_pad), jnp.float32).at[0, :n_out].set(layer["beta"])
    return [w_p.astype(MXU_DTYPE), b_p, g_p, bt_p], n_out


def _flatten_padded_mlp(layers):
    flat, n_outs = [], []
    for layer in layers:
        p, n_out = _pad_layer_params(layer)
        flat.extend(p)
        n_outs.append(n_out)
    return flat, tuple(n_outs)


def _full_spec(shape):
    nd = len(shape)
    return pl.BlockSpec(shape, lambda i, _nd=nd: (0,) * _nd)


def _bytes(*arrays):
    return int(sum(a.size * a.dtype.itemsize for a in arrays))


# ----------------------------------------------------------------------------
# Forward pass (use_deepest=True configuration; the use_deepest=False path of
# the original module expects Python lists of tensors and is not exercised by
# PropDeconv.forward with plain tensors)
# ----------------------------------------------------------------------------
def propdeconv_forward(params, bulk, reference):
    n_bulk, n_genes = bulk.shape
    n_labels = reference.shape[0]

    # padded geometry (lane-dense feature dims, sublane-aligned rows)
    g_pad = _round_up(n_genes, LANE)
    lab_pad = _round_up(n_labels, LANE)   # z_ref rows == z_prop/prop feature dim

    ref_flat, ref_n_outs = _flatten_padded_mlp(params["reference_encoder"])
    blk_flat, blk_n_outs = _flatten_padded_mlp(params["bulk_encoder"])
    dec_flat, dec_n_outs = _flatten_padded_mlp(params["prop_decoder_mlp"])
    h_pad = _round_up(ref_n_outs[-1], LANE)   # padded n_hidden

    # matmul-only inputs are pre-cast to bf16 (halves their DMA bytes)
    ref_in = (jnp.zeros((lab_pad, g_pad), jnp.float32)
              .at[:n_labels, :n_genes].set(reference).astype(MXU_DTYPE))

    tm = min(256, _round_up(n_bulk, SUBLANE))   # bulk row tile (multiple of 8)
    m_pad = _round_up(n_bulk, tm)
    grid_m = m_pad // tm
    bulk_in = (jnp.zeros((m_pad, g_pad), jnp.float32)
               .at[:n_bulk, :n_genes].set(bulk).astype(MXU_DTYPE))

    # ---------------- Kernel A: fused reference encoder ----------------
    ref_ws = ref_flat[0::4]
    ce_a = pl.CostEstimate(
        flops=int(sum(2 * lab_pad * w.shape[0] * w.shape[1] for w in ref_ws)),
        transcendentals=int(sum(lab_pad * w.shape[1] for w in ref_ws)),
        bytes_accessed=_bytes(ref_in, *ref_flat) + lab_pad * h_pad * 4,
    )
    z_ref = pl.pallas_call(
        functools.partial(_ref_encoder_kernel, ref_n_outs),
        out_shape=jax.ShapeDtypeStruct((lab_pad, h_pad), jnp.float32),
        grid=(1,),
        in_specs=[_full_spec(ref_in.shape)] + [_full_spec(p.shape) for p in ref_flat],
        out_specs=_full_spec((lab_pad, h_pad)),
        compiler_params=pltpu.CompilerParams(dimension_semantics=("arbitrary",)),
        cost_estimate=ce_a,
    )(ref_in, *ref_flat)

    # ---------------- Kernel B: fused bulk path ----------------
    blk_ws = blk_flat[0::4]
    dec_ws = dec_flat[0::4]
    mm_flops = sum(2 * m_pad * w.shape[0] * w.shape[1] for w in blk_ws + dec_ws)
    mm_flops += 2 * m_pad * h_pad * lab_pad          # multiplier matmul
    ce_b = pl.CostEstimate(
        flops=int(mm_flops),
        transcendentals=int(sum(m_pad * w.shape[1] for w in blk_ws + dec_ws) + m_pad),
        bytes_accessed=_bytes(bulk_in, z_ref, *blk_flat, *dec_flat)
        + m_pad * lab_pad * 4,
    )

    const2 = lambda i: (0, 0)   # weights / z_ref: VMEM-resident across grid
    prop_full = pl.pallas_call(
        functools.partial(_bulk_path_kernel, blk_n_outs, dec_n_outs, n_labels),
        out_shape=jax.ShapeDtypeStruct((m_pad, lab_pad), jnp.float32),
        grid=(grid_m,),
        in_specs=(
            [pl.BlockSpec((tm, g_pad), lambda i: (i, 0)),
             pl.BlockSpec((lab_pad, h_pad), const2)]
            + [pl.BlockSpec(p.shape, const2) for p in blk_flat + dec_flat]
        ),
        out_specs=pl.BlockSpec((tm, lab_pad), lambda i: (i, 0)),
        compiler_params=pltpu.CompilerParams(dimension_semantics=("parallel",)),
        cost_estimate=ce_b,
    )(bulk_in, z_ref, *blk_flat, *dec_flat)

    # strip row/lane padding (padded rows are don't-care and sliced away)
    return {"prop": prop_full[:n_bulk, :n_labels]}


# ----------------------------------------------------------------------------
if __name__ == "__main__":
    n_labels, n_genes, n_hidden = 8, 32, 16
    mlp_hidden = [64]
    n_bulk = 4

    key = jax.random.PRNGKey(0)
    k_bulk, k_refm, k_params = jax.random.split(key, 3)
    bulk = jax.random.normal(k_bulk, (n_bulk, n_genes), jnp.float32)
    reference = jax.random.normal(k_refm, (n_labels, n_genes), jnp.float32)

    params = init_propdeconv_params(k_params, n_labels, n_genes, mlp_hidden, n_hidden)

    out = propdeconv_forward(params, bulk, reference)
    prop = jax.block_until_ready(out["prop"])
    assert prop.shape == (n_bulk, n_labels)
    print("KERNEL_OK")
</pallas_src>

<mosaic_0001>
module attributes {stable_mosaic.version = 11 : i64} {
  func.func @_ref_encoder_kernel(%arg0: i32, %arg1: memref<128x128xbf16, #tpu.memory_space<vmem>>, %arg2: memref<128x128xbf16, #tpu.memory_space<vmem>>, %arg3: memref<1x128xf32, #tpu.memory_space<vmem>>, %arg4: memref<1x128xf32, #tpu.memory_space<vmem>>, %arg5: memref<1x128xf32, #tpu.memory_space<vmem>>, %arg6: memref<128x128xbf16, #tpu.memory_space<vmem>>, %arg7: memref<1x128xf32, #tpu.memory_space<vmem>>, %arg8: memref<1x128xf32, #tpu.memory_space<vmem>>, %arg9: memref<1x128xf32, #tpu.memory_space<vmem>>, %arg10: memref<128x128xf32, #tpu.memory_space<vmem>>) attributes {dimension_semantics = [#tpu.dimension_semantics<arbitrary>], iteration_bounds = array<i64: 1>, scalar_prefetch = 0 : i64, scratch_operands = 0 : i64, tpu.core_type = #tpu.core_type<tc>, window_params = [{pipeline_mode = #tpu.pipeline_mode<synchronous>, transform_indices = @transform_0, window_bounds = array<i64: 128, 128>}, {pipeline_mode = #tpu.pipeline_mode<synchronous>, transform_indices = @transform_1, window_bounds = array<i64: 128, 128>}, {pipeline_mode = #tpu.pipeline_mode<synchronous>, transform_indices = @transform_2, window_bounds = array<i64: 1, 128>}, {pipeline_mode = #tpu.pipeline_mode<synchronous>, transform_indices = @transform_3, window_bounds = array<i64: 1, 128>}, {pipeline_mode = #tpu.pipeline_mode<synchronous>, transform_indices = @transform_4, window_bounds = array<i64: 1, 128>}, {pipeline_mode = #tpu.pipeline_mode<synchronous>, transform_indices = @transform_5, window_bounds = array<i64: 128, 128>}, {pipeline_mode = #tpu.pipeline_mode<synchronous>, transform_indices = @transform_6, window_bounds = array<i64: 1, 128>}, {pipeline_mode = #tpu.pipeline_mode<synchronous>, transform_indices = @transform_7, window_bounds = array<i64: 1, 128>}, {pipeline_mode = #tpu.pipeline_mode<synchronous>, transform_indices = @transform_8, window_bounds = array<i64: 1, 128>}, {pipeline_mode = #tpu.pipeline_mode<synchronous>, transform_indices = @transform_9, window_bounds = array<i64: 128, 128>}]} {
    %c0 = arith.constant 0 : index
    %c0_0 = arith.constant 0 : index
    %0 = vector.load %arg1[%c0, %c0_0] : memref<128x128xbf16, #tpu.memory_space<vmem>>, vector<128x128xbf16>
    %c0_1 = arith.constant 0 : index
    %c0_2 = arith.constant 0 : index
    %1 = vector.load %arg2[%c0_1, %c0_2] : memref<128x128xbf16, #tpu.memory_space<vmem>>, vector<128x128xbf16>
    %c0_3 = arith.constant 0 : index
    %c0_4 = arith.constant 0 : index
    %2 = vector.load %arg3[%c0_3, %c0_4] : memref<1x128xf32, #tpu.memory_space<vmem>>, vector<1x128xf32>
    %c0_5 = arith.constant 0 : index
    %c0_6 = arith.constant 0 : index
    %3 = vector.load %arg4[%c0_5, %c0_6] : memref<1x128xf32, #tpu.memory_space<vmem>>, vector<1x128xf32>
    %c0_7 = arith.constant 0 : index
    %c0_8 = arith.constant 0 : index
    %4 = vector.load %arg5[%c0_7, %c0_8] : memref<1x128xf32, #tpu.memory_space<vmem>>, vector<1x128xf32>
    %cst = arith.constant dense<0.000000e+00> : vector<128x128xf32>
    %5 = tpu.matmul %0, %1, %cst {dimension_numbers = #tpu.dot_dimension_numbers<[1], [0], [0], [1], [0, 0, 1, 1], [], []>} : vector<128x128xbf16>, vector<128x128xbf16>, vector<128x128xf32> -> vector<128x128xf32>
    %6 = vector.broadcast %2 : vector<1x128xf32> to vector<128x128xf32>
    %7 = arith.addf %5, %6 : vector<128x128xf32>
    %cst_9 = arith.constant 5.000000e-01 : f32
    %8 = vector.broadcast %cst_9 : f32 to vector<128x128xf32>
    %9 = arith.mulf %8, %7 : vector<128x128xf32>
    %cst_10 = arith.constant 0.707106769 : f32
    %10 = vector.broadcast %cst_10 : f32 to vector<128x128xf32>
    %11 = arith.mulf %7, %10 : vector<128x128xf32>
    %12 = math.erf %11 : vector<128x128xf32>
    %cst_11 = arith.constant 1.000000e+00 : f32
    %13 = vector.broadcast %cst_11 : f32 to vector<128x128xf32>
    %14 = arith.addf %13, %12 : vector<128x128xf32>
    %15 = arith.mulf %9, %14 : vector<128x128xf32>
    %16 = tpu.iota {dimensions = array<i32: 1>} : vector<1x128xi32>
    %c64_i32 = arith.constant 64 : i32
    %17 = vector.broadcast %c64_i32 : i32 to vector<1x128xi32>
    %18 = arith.cmpi slt, %16, %17 : vector<1x128xi32>
    %19 = arith.extui %18 : vector<1x128xi1> to vector<1x128xi32>
    %20 = arith.sitofp %19 : vector<1x128xi32> to vector<1x128xf32>
    %21 = vector.broadcast %20 : vector<1x128xf32> to vector<128x128xf32>
    %22 = arith.mulf %15, %21 : vector<128x128xf32>
    %cst_12 = arith.constant dense<0.000000e+00> : vector<128xf32>
    %23 = vector.multi_reduction <add>, %22, %cst_12 [1] : vector<128x128xf32> to vector<128xf32>
    %24 = vector.shape_cast %23 : vector<128xf32> to vector<128x1xf32>
    %cst_13 = arith.constant 1.562500e-02 : f32
    %25 = vector.broadcast %cst_13 : f32 to vector<128x1xf32>
    %26 = arith.mulf %24, %25 : vector<128x1xf32>
    %27 = vector.broadcast %26 : vector<128x1xf32> to vector<128x128xf32>
    %28 = arith.subf %15, %27 : vector<128x128xf32>
    %29 = vector.broadcast %20 : vector<1x128xf32> to vector<128x128xf32>
    %30 = arith.mulf %28, %29 : vector<128x128xf32>
    %31 = arith.mulf %30, %30 : vector<128x128xf32>
    %cst_14 = arith.constant dense<0.000000e+00> : vector<128xf32>
    %32 = vector.multi_reduction <add>, %31, %cst_14 [1] : vector<128x128xf32> to vector<128xf32>
    %33 = vector.shape_cast %32 : vector<128xf32> to vector<128x1xf32>
    %cst_15 = arith.constant 1.562500e-02 : f32
    %34 = vector.broadcast %cst_15 : f32 to vector<128x1xf32>
    %35 = arith.mulf %33, %34 : vector<128x1xf32>
    %36 = vector.broadcast %26 : vector<128x1xf32> to vector<128x128xf32>
    %37 = arith.subf %15, %36 : vector<128x128xf32>
    %cst_16 = arith.constant 9.99999974E-6 : f32
    %38 = vector.broadcast %cst_16 : f32 to vector<128x1xf32>
    %39 = arith.addf %35, %38 : vector<128x1xf32>
    %40 = math.rsqrt %39 : vector<128x1xf32>
    %41 = vector.broadcast %40 : vector<128x1xf32> to vector<128x128xf32>
    %42 = arith.mulf %37, %41 : vector<128x128xf32>
    %43 = vector.broadcast %3 : vector<1x128xf32> to vector<128x128xf32>
    %44 = arith.mulf %42, %43 : vector<128x128xf32>
    %45 = vector.broadcast %4 : vector<1x128xf32> to vector<128x128xf32>
    %46 = arith.addf %44, %45 : vector<128x128xf32>
    %c0_17 = arith.constant 0 : index
    %c0_18 = arith.constant 0 : index
    %47 = vector.load %arg6[%c0_17, %c0_18] : memref<128x128xbf16, #tpu.memory_space<vmem>>, vector<128x128xbf16>
    %c0_19 = arith.constant 0 : index
    %c0_20 = arith.constant 0 : index
    %48 = vector.load %arg7[%c0_19, %c0_20] : memref<1x128xf32, #tpu.memory_space<vmem>>, vector<1x128xf32>
    %c0_21 = arith.constant 0 : index
    %c0_22 = arith.constant 0 : index
    %49 = vector.load %arg8[%c0_21, %c0_22] : memref<1x128xf32, #tpu.memory_space<vmem>>, vector<1x128xf32>
    %c0_23 = arith.constant 0 : index
    %c0_24 = arith.constant 0 : index
    %50 = vector.load %arg9[%c0_23, %c0_24] : memref<1x128xf32, #tpu.memory_space<vmem>>, vector<1x128xf32>
    %51 = arith.truncf %46 : vector<128x128xf32> to vector<128x128xbf16>
    %cst_25 = arith.constant dense<0.000000e+00> : vector<128x128xf32>
    %52 = tpu.matmul %51, %47, %cst_25 {dimension_numbers = #tpu.dot_dimension_numbers<[1], [0], [0], [1], [0, 0, 1, 1], [], []>} : vector<128x128xbf16>, vector<128x128xbf16>, vector<128x128xf32> -> vector<128x128xf32>
    %53 = vector.broadcast %48 : vector<1x128xf32> to vector<128x128xf32>
    %54 = arith.addf %52, %53 : vector<128x128xf32>
    %cst_26 = arith.constant 5.000000e-01 : f32
    %55 = vector.broadcast %cst_26 : f32 to vector<128x128xf32>
    %56 = arith.mulf %55, %54 : vector<128x128xf32>
    %cst_27 = arith.constant 0.707106769 : f32
    %57 = vector.broadcast %cst_27 : f32 to vector<128x128xf32>
    %58 = arith.mulf %54, %57 : vector<128x128xf32>
    %59 = math.erf %58 : vector<128x128xf32>
    %cst_28 = arith.constant 1.000000e+00 : f32
    %60 = vector.broadcast %cst_28 : f32 to vector<128x128xf32>
    %61 = arith.addf %60, %59 : vector<128x128xf32>
    %62 = arith.mulf %56, %61 : vector<128x128xf32>
    %63 = tpu.iota {dimensions = array<i32: 1>} : vector<1x128xi32>
    %c16_i32 = arith.constant 16 : i32
    %64 = vector.broadcast %c16_i32 : i32 to vector<1x128xi32>
    %65 = arith.cmpi slt, %63, %64 : vector<1x128xi32>
    %66 = arith.extui %65 : vector<1x128xi1> to vector<1x128xi32>
    %67 = arith.sitofp %66 : vector<1x128xi32> to vector<1x128xf32>
    %68 = vector.broadcast %67 : vector<1x128xf32> to vector<128x128xf32>
    %69 = arith.mulf %62, %68 : vector<128x128xf32>
    %cst_29 = arith.constant dense<0.000000e+00> : vector<128xf32>
    %70 = vector.multi_reduction <add>, %69, %cst_29 [1] : vector<128x128xf32> to vector<128xf32>
    %71 = vector.shape_cast %70 : vector<128xf32> to vector<128x1xf32>
    %cst_30 = arith.constant 6.250000e-02 : f32
    %72 = vector.broadcast %cst_30 : f32 to vector<128x1xf32>
    %73 = arith.mulf %71, %72 : vector<128x1xf32>
    %74 = vector.broadcast %73 : vector<128x1xf32> to vector<128x128xf32>
    %75 = arith.subf %62, %74 : vector<128x128xf32>
    %76 = vector.broadcast %67 : vector<1x128xf32> to vector<128x128xf32>
    %77 = arith.mulf %75, %76 : vector<128x128xf32>
    %78 = arith.mulf %77, %77 : vector<128x128xf32>
    %cst_31 = arith.constant dense<0.000000e+00> : vector<128xf32>
    %79 = vector.multi_reduction <add>, %78, %cst_31 [1] : vector<128x128xf32> to vector<128xf32>
    %80 = vector.shape_cast %79 : vector<128xf32> to vector<128x1xf32>
    %cst_32 = arith.constant 6.250000e-02 : f32
    %81 = vector.broadcast %cst_32 : f32 to vector<128x1xf32>
    %82 = arith.mulf %80, %81 : vector<128x1xf32>
    %83 = vector.broadcast %73 : vector<128x1xf32> to vector<128x128xf32>
    %84 = arith.subf %62, %83 : vector<128x128xf32>
    %cst_33 = arith.constant 9.99999974E-6 : f32
    %85 = vector.broadcast %cst_33 : f32 to vector<128x1xf32>
    %86 = arith.addf %82, %85 : vector<128x1xf32>
    %87 = math.rsqrt %86 : vector<128x1xf32>
    %88 = vector.broadcast %87 : vector<128x1xf32> to vector<128x128xf32>
    %89 = arith.mulf %84, %88 : vector<128x128xf32>
    %90 = vector.broadcast %49 : vector<1x128xf32> to vector<128x128xf32>
    %91 = arith.mulf %89, %90 : vector<128x128xf32>
    %92 = vector.broadcast %50 : vector<1x128xf32> to vector<128x128xf32>
    %93 = arith.addf %91, %92 : vector<128x128xf32>
    %c0_34 = arith.constant 0 : index
    %c0_35 = arith.constant 0 : index
    %94 = vector.load %arg10[%c0_34, %c0_35] : memref<128x128xf32, #tpu.memory_space<vmem>>, vector<128x128xf32>
    tpu.vector_store %arg10[%c0_34, %c0_35], %93 {strides = array<i32>} : memref<128x128xf32, #tpu.memory_space<vmem>>, vector<128x128xf32>,
    return
  }
  func.func @transform_0(%arg0: i32) -> (i32, i32) {
    %c0_i32 = arith.constant 0 : i32
    %c0_i32_0 = arith.constant 0 : i32
    %c0_i32_1 = arith.constant 0 : i32
    return %c0_i32, %c0_i32_0 : i32, i32
  }
  func.func @transform_1(%arg0: i32) -> (i32, i32) {
    %c0_i32 = arith.constant 0 : i32
    %c0_i32_0 = arith.constant 0 : i32
    %c0_i32_1 = arith.constant 0 : i32
    return %c0_i32, %c0_i32_0 : i32, i32
  }
  func.func @transform_2(%arg0: i32) -> (i32, i32) {
    %c0_i32 = arith.constant 0 : i32
    %c0_i32_0 = arith.constant 0 : i32
    %c0_i32_1 = arith.constant 0 : i32
    return %c0_i32, %c0_i32_0 : i32, i32
  }
  func.func @transform_3(%arg0: i32) -> (i32, i32) {
    %c0_i32 = arith.constant 0 : i32
    %c0_i32_0 = arith.constant 0 : i32
    %c0_i32_1 = arith.constant 0 : i32
    return %c0_i32, %c0_i32_0 : i32, i32
  }
  func.func @transform_4(%arg0: i32) -> (i32, i32) {
    %c0_i32 = arith.constant 0 : i32
    %c0_i32_0 = arith.constant 0 : i32
    %c0_i32_1 = arith.constant 0 : i32
    return %c0_i32, %c0_i32_0 : i32, i32
  }
  func.func @transform_5(%arg0: i32) -> (i32, i32) {
    %c0_i32 = arith.constant 0 : i32
    %c0_i32_0 = arith.constant 0 : i32
    %c0_i32_1 = arith.constant 0 : i32
    return %c0_i32, %c0_i32_0 : i32, i32
  }
  func.func @transform_6(%arg0: i32) -> (i32, i32) {
    %c0_i32 = arith.constant 0 : i32
    %c0_i32_0 = arith.constant 0 : i32
    %c0_i32_1 = arith.constant 0 : i32
    return %c0_i32, %c0_i32_0 : i32, i32
  }
  func.func @transform_7(%arg0: i32) -> (i32, i32) {
    %c0_i32 = arith.constant 0 : i32
    %c0_i32_0 = arith.constant 0 : i32
    %c0_i32_1 = arith.constant 0 : i32
    return %c0_i32, %c0_i32_0 : i32, i32
  }
  func.func @transform_8(%arg0: i32) -> (i32, i32) {
    %c0_i32 = arith.constant 0 : i32
    %c0_i32_0 = arith.constant 0 : i32
    %c0_i32_1 = arith.constant 0 : i32
    return %c0_i32, %c0_i32_0 : i32, i32
  }
  func.func @transform_9(%arg0: i32) -> (i32, i32) {
    %c0_i32 = arith.constant 0 : i32
    %c0_i32_0 = arith.constant 0 : i32
    %c0_i32_1 = arith.constant 0 : i32
    return %c0_i32, %c0_i32_0 : i32, i32
  }
}

</mosaic_0001>

<llo_original>
// kernel: tpu_custom_call.1
$region0: #{tpu_custom_call.1}
  #allocation0 [shape = 'u32[]', space=smem, size = 0x4, offset = 0x4, fixed_abs, tag = 'smem constant byte address 0x4 - core index']
  #allocation1 [shape = 'u32[72,128]{1,0:T(1,128)}', space=vmem, size = 0x9000, scoped, tag = 'internal scratch']
  %s0 = inlined_call_operand.hbm [shape: bf16[128,128], index: 0, kind: input, shape index: {}]
  %s1 = inlined_call_operand.hbm [shape: bf16[128,128], index: 1, kind: input, shape index: {}]
  %s2 = inlined_call_operand.vmem [shape: f32[1,128], index: 2, kind: input, shape index: {}]
  %s3 = inlined_call_operand.vmem [shape: f32[1,128], index: 3, kind: input, shape index: {}]
  %s4 = inlined_call_operand.vmem [shape: f32[1,128], index: 4, kind: input, shape index: {}]
  %s5 = inlined_call_operand.hbm [shape: bf16[128,128], index: 5, kind: input, shape index: {}]
  %s6 = inlined_call_operand.vmem [shape: f32[1,128], index: 6, kind: input, shape index: {}]
  %s7 = inlined_call_operand.vmem [shape: f32[1,128], index: 7, kind: input, shape index: {}]
  %s8 = inlined_call_operand.vmem [shape: f32[1,128], index: 8, kind: input, shape index: {}]
  %s9 = inlined_call_operand.hbm [shape: f32[128,128], index: 9, kind: output, shape index: {}]
  %s10 = sld [smem:[#allocation0]]
  $region58: #{tpu_custom_call.1} parent=0
    _
  %s12 = ssub.s32 1, %s10
  %s13 = scalar_select 0, %s12, %s10
  $region1: #{tpu_custom_call.1} parent=0
    #allocation2 [shape = 'u8[32768]{0}', space=vmem, size = 0x8000, scoped, tag = 'input window, operand 0, single buffered']
    #allocation3 [shape = 's32[1]{0}', space=sflag, size = 0x4, scoped, tag = 'scoped memory for tpu_custom_call.1']
    #allocation4 [shape = 's32[1]{0}', space=sflag, size = 0x4, scoped, tag = 'scoped memory for tpu_custom_call.1']
    #allocation5 [shape = 'u8[32768]{0}', space=vmem, size = 0x8000, scoped, tag = 'input window, operand 1, single buffered']
    #allocation6 [shape = 's32[1]{0}', space=sflag, size = 0x4, scoped, tag = 'scoped memory for tpu_custom_call.1']
    #allocation7 [shape = 'u8[32768]{0}', space=vmem, size = 0x8000, scoped, tag = 'input window, operand 5, single buffered']
    #allocation8 [shape = 'u8[65536]{0}', space=vmem, size = 0x10000, scoped, tag = 'output window, operand 0, single buffered']
    %14 = vsyncpa [#allocation3], 0
    %15 = vsyncpa [#allocation6], 0
    %16 = vsyncpa [#allocation4], 0
    // Predicated region
    $region2: #{tpu_custom_call.1} parent=1 // pred_check
      _
    $region3: #{tpu_custom_call.1} parent=1 // pred_check_branch
      %18 = sbr.rel (0) target = $region5
    $region4: #{tpu_custom_call.1} parent=1 // pred_region
      %20 = vsyncadd [#allocation3], 0
      %s21 = sshll.u32 %s0, 4
      %s22 = int_to_ptr.hbm [resolvable:$true] %s21
      %s23 = sshll.u32 [#allocation2], 4
      %s24 = int_to_ptr.vmem [resolvable:$true] %s23
      %29 = dma.hbm_to_vmem [thread:$0]  %s22, 1024, %s24, [#allocation3], 64, 64, 4
    $region5: #{tpu_custom_call.1} parent=1 // pred_fallthru
      _
    // Predicated region
    $region6: #{tpu_custom_call.1} parent=1 // pred_check
      _
    $region7: #{tpu_custom_call.1} parent=1 // pred_check_branch
      %31 = sbr.rel (0) target = $region9
    $region8: #{tpu_custom_call.1} parent=1 // pred_region
      %33 = vsyncadd [#allocation6], 0
      %s34 = sshll.u32 %s1, 4
      %s35 = int_to_ptr.hbm [resolvable:$true] %s34
      %s36 = sshll.u32 [#allocation5], 4
      %s37 = int_to_ptr.vmem [resolvable:$true] %s36
      %42 = dma.hbm_to_vmem [thread:$0]  %s35, 1024, %s37, [#allocation6], 64, 64, 4
    $region9: #{tpu_custom_call.1} parent=1 // pred_fallthru
      _
    // Predicated region
    $region10: #{tpu_custom_call.1} parent=1 // pred_check
      _
    $region11: #{tpu_custom_call.1} parent=1 // pred_check_branch
      %44 = sbr.rel (0) target = $region13
    $region12: #{tpu_custom_call.1} parent=1 // pred_region
      _
    $region13: #{tpu_custom_call.1} parent=1 // pred_fallthru
      _
    // Predicated region
    $region14: #{tpu_custom_call.1} parent=1 // pred_check
      _
    $region15: #{tpu_custom_call.1} parent=1 // pred_check_branch
      %46 = sbr.rel (0) target = $region17
    $region16: #{tpu_custom_call.1} parent=1 // pred_region
      _
    $region17: #{tpu_custom_call.1} parent=1 // pred_fallthru
      _
    // Predicated region
    $region18: #{tpu_custom_call.1} parent=1 // pred_check
      _
    $region19: #{tpu_custom_call.1} parent=1 // pred_check_branch
      %48 = sbr.rel (0) target = $region21
    $region20: #{tpu_custom_call.1} parent=1 // pred_region
      _
    $region21: #{tpu_custom_call.1} parent=1 // pred_fallthru
      _
    // Predicated region
    $region22: #{tpu_custom_call.1} parent=1 // pred_check
      _
    $region23: #{tpu_custom_call.1} parent=1 // pred_check_branch
      %50 = sbr.rel (0) target = $region25
    $region24: #{tpu_custom_call.1} parent=1 // pred_region
      %52 = vsyncadd [#allocation6], 0
      %s53 = sshll.u32 %s5, 4
      %s54 = int_to_ptr.hbm [resolvable:$true] %s53
      %s55 = sshll.u32 [#allocation7], 4
      %s56 = int_to_ptr.vmem [resolvable:$true] %s55
      %61 = dma.hbm_to_vmem [thread:$0]  %s54, 1024, %s56, [#allocation6], 64, 64, 4
    $region25: #{tpu_custom_call.1} parent=1 // pred_fallthru
      _
    // Predicated region
    $region26: #{tpu_custom_call.1} parent=1 // pred_check
      _
    $region27: #{tpu_custom_call.1} parent=1 // pred_check_branch
      %63 = sbr.rel (0) target = $region29
    $region28: #{tpu_custom_call.1} parent=1 // pred_region
      _
    $region29: #{tpu_custom_call.1} parent=1 // pred_fallthru
      _
    // Predicated region
    $region30: #{tpu_custom_call.1} parent=1 // pred_check
      _
    $region31: #{tpu_custom_call.1} parent=1 // pred_check_branch
      %65 = sbr.rel (0) target = $region33
    $region32: #{tpu_custom_call.1} parent=1 // pred_region
      _
    $region33: #{tpu_custom_call.1} parent=1 // pred_fallthru
      _
    // Predicated region
    $region34: #{tpu_custom_call.1} parent=1 // pred_check
      _
    $region35: #{tpu_custom_call.1} parent=1 // pred_check_branch
      %67 = sbr.rel (0) target = $region37
    $region36: #{tpu_custom_call.1} parent=1 // pred_region
      _
    $region37: #{tpu_custom_call.1} parent=1 // pred_fallthru
      _
    // Predicated region
    $region38: #{tpu_custom_call.1} parent=1 // pred_check
      _
    $region39: #{tpu_custom_call.1} parent=1 // pred_check_branch
      %69 = sbr.rel (0) target = $region41
    $region40: #{tpu_custom_call.1} parent=1 // pred_region
      %71 = dma.done [#allocation3], 1024
    $region41: #{tpu_custom_call.1} parent=1 // pred_fallthru
      _
    // Predicated region
    $region42: #{tpu_custom_call.1} parent=1 // pred_check
      _
    $region43: #{tpu_custom_call.1} parent=1 // pred_check_branch
      %73 = sbr.rel (0) target = $region45
    $region44: #{tpu_custom_call.1} parent=1 // pred_region
      %75 = dma.done [#allocation6], 1024
    $region45: #{tpu_custom_call.1} parent=1 // pred_fallthru
      _
    // Predicated region
    $region46: #{tpu_custom_call.1} parent=1 // pred_check
      _
    $region47: #{tpu_custom_call.1} parent=1 // pred_check_branch
      %77 = sbr.rel (0) target = $region49
    $region48: #{tpu_custom_call.1} parent=1 // pred_region
      %79 = dma.done [#allocation6], 1024
    $region49: #{tpu_custom_call.1} parent=1 // pred_fallthru
      _
    %v80 = vld [vmem:[#allocation2] sm:$0xf]
    %v81 = vld [vmem:[#allocation2 + $0x4] sm:$0xf]
    %v82 = vld [vmem:[#allocation2 + $0x8] sm:$0xf]
    %v83 = vld [vmem:[#allocation2 + $0xc] sm:$0xf]
    %v84 = vld [vmem:[#allocation2 + $0x10] sm:$0xf]
    %v85 = vld [vmem:[#allocation2 + $0x14] sm:$0xf]
    %v86 = vld [vmem:[#allocation2 + $0x18] sm:$0xf]
    %v87 = vld [vmem:[#allocation2 + $0x1c] sm:$0xf]
    %v88 = vld [vmem:[#allocation2 + $0x20] sm:$0xf]
    %v89 = vld [vmem:[#allocation2 + $0x24] sm:$0xf]
    %v90 = vld [vmem:[#allocation2 + $0x28] sm:$0xf]
    %v91 = vld [vmem:[#allocation2 + $0x2c] sm:$0xf]
    %v92 = vld [vmem:[#allocation2 + $0x30] sm:$0xf]
    %v93 = vld [vmem:[#allocation2 + $0x34] sm:$0xf]
    %v94 = vld [vmem:[#allocation2 + $0x38] sm:$0xf]
    %v95 = vld [vmem:[#allocation2 + $0x3c] sm:$0xf]
    %v96 = vld [vmem:[#allocation5] sm:$0xf]
    %v97 = vld [vmem:[#allocation5 + $0x4] sm:$0xf]
    %v98 = vld [vmem:[#allocation5 + $0x8] sm:$0xf]
    %v99 = vld [vmem:[#allocation5 + $0xc] sm:$0xf]
    %v100 = vld [vmem:[#allocation5 + $0x10] sm:$0xf]
    %v101 = vld [vmem:[#allocation5 + $0x14] sm:$0xf]
    %v102 = vld [vmem:[#allocation5 + $0x18] sm:$0xf]
    %v103 = vld [vmem:[#allocation5 + $0x1c] sm:$0xf]
    %v104 = vld [vmem:[#allocation5 + $0x20] sm:$0xf]
    %v105 = vld [vmem:[#allocation5 + $0x24] sm:$0xf]
    %v106 = vld [vmem:[#allocation5 + $0x28] sm:$0xf]
    %v107 = vld [vmem:[#allocation5 + $0x2c] sm:$0xf]
    %v108 = vld [vmem:[#allocation5 + $0x30] sm:$0xf]
    %v109 = vld [vmem:[#allocation5 + $0x34] sm:$0xf]
    %v110 = vld [vmem:[#allocation5 + $0x38] sm:$0xf]
    %v111 = vld [vmem:[#allocation5 + $0x3c] sm:$0xf]
    %v112 = vld [vmem:[%s2] sm:$0x1]
    %v113 = vld [vmem:[%s3] sm:$0x1]
    %v114 = vld [vmem:[%s4] sm:$0x1]
    %v116 = vperm.slane %v112, 0
    %v134 = vunpack.c.l.b16 %v80
    %v135 = vunpack.c.l.b16 %v81
    %v136 = vunpack.c.l.b16 %v82
    %v137 = vunpack.c.l.b16 %v83
    %v138 = vunpack.c.l.b16 %v84
    %v139 = vunpack.c.l.b16 %v85
    %v140 = vunpack.c.l.b16 %v86
    %v141 = vunpack.c.l.b16 %v87
    %v142 = vunpack.c.l.b16 %v88
    %v143 = vunpack.c.l.b16 %v89
    %v144 = vunpack.c.l.b16 %v90
    %v145 = vunpack.c.l.b16 %v91
    %v146 = vunpack.c.l.b16 %v92
    %v147 = vunpack.c.l.b16 %v93
    %v148 = vunpack.c.l.b16 %v94
    %v149 = vunpack.c.l.b16 %v95
    %v150 = vpack.c.b16 %v135, %v134
    %v151 = vpack.c.b16 %v137, %v136
    %v152 = vpack.c.b16 %v139, %v138
    %v153 = vpack.c.b16 %v141, %v140
    %v154 = vpack.c.b16 %v143, %v142
    %v155 = vpack.c.b16 %v145, %v144
    %v156 = vpack.c.b16 %v147, %v146
    %v157 = vpack.c.b16 %v149, %v148
    %v182 = vunpack.c.l.b16 %v96
    %v183 = vunpack.c.l.b16 %v97
    %v184 = vunpack.c.l.b16 %v98
    %v185 = vunpack.c.l.b16 %v99
    %v186 = vunpack.c.l.b16 %v100
    %v187 = vunpack.c.l.b16 %v101
    %v188 = vunpack.c.l.b16 %v102
    %v189 = vunpack.c.l.b16 %v103
    %v190 = vunpack.c.l.b16 %v104
    %v191 = vunpack.c.l.b16 %v105
    %v192 = vunpack.c.l.b16 %v106
    %v193 = vunpack.c.l.b16 %v107
    %v194 = vunpack.c.l.b16 %v108
    %v195 = vunpack.c.l.b16 %v109
    %v196 = vunpack.c.l.b16 %v110
    %v197 = vunpack.c.l.b16 %v111
    %v198 = vpack.c.b16 %v183, %v182
    %v199 = vpack.c.b16 %v185, %v184
    %v200 = vpack.c.b16 %v187, %v186
    %v201 = vpack.c.b16 %v189, %v188
    %v202 = vpack.c.b16 %v191, %v190
    %v203 = vpack.c.b16 %v193, %v192
    %v204 = vpack.c.b16 %v195, %v194
    %v205 = vpack.c.b16 %v197, %v196
    %214 = vmatpush.bf16.msra.mxu0 %v205
    %215 = vmatpush.bf16.msra.mxu0 %v204
    %216 = vmatpush.bf16.msra.mxu0 %v203
    %217 = vmatpush.bf16.msra.mxu0 %v202
    %218 = vmatpush.bf16.msra.mxu0 %v201
    %219 = vmatpush.bf16.msra.mxu0 %v200
    %220 = vmatpush.bf16.msra.mxu0 %v199
    %221 = vmatpush.bf16.msra.mxu0 %v198
    %222 = vmatmul.bf16.gmra.mxu0 %v150
    %v223 = vpop.f32.mrf.mxu0
    %v224 = vadd.f32 %v116, %v223
    %v225 = vpop.f32.mrf.mxu0
    %v226 = vadd.f32 %v116, %v225
    %227 = vmatmul.bf16.gmra.mxu0 %v151
    %v228 = vpop.f32.mrf.mxu0
    %v229 = vadd.f32 %v116, %v228
    %v230 = vpop.f32.mrf.mxu0
    %v231 = vadd.f32 %v116, %v230
    %232 = vmatmul.bf16.gmra.mxu0 %v152
    %v233 = vpop.f32.mrf.mxu0
    %v234 = vadd.f32 %v116, %v233
    %v235 = vpop.f32.mrf.mxu0
    %v236 = vadd.f32 %v116, %v235
    %237 = vmatmul.bf16.gmra.mxu0 %v153
    %v238 = vpop.f32.mrf.mxu0
    %v239 = vadd.f32 %v116, %v238
    %v240 = vpop.f32.mrf.mxu0
    %v241 = vadd.f32 %v116, %v240
    %242 = vmatmul.bf16.gmra.mxu0 %v154
    %v243 = vpop.f32.mrf.mxu0
    %v244 = vadd.f32 %v116, %v243
    %v245 = vpop.f32.mrf.mxu0
    %v246 = vadd.f32 %v116, %v245
    %247 = vmatmul.bf16.gmra.mxu0 %v155
    %v248 = vpop.f32.mrf.mxu0
    %v249 = vadd.f32 %v116, %v248
    %v250 = vpop.f32.mrf.mxu0
    %v251 = vadd.f32 %v116, %v250
    %252 = vmatmul.bf16.gmra.mxu0 %v156
    %v253 = vpop.f32.mrf.mxu0
    %v254 = vadd.f32 %v116, %v253
    %v255 = vpop.f32.mrf.mxu0
    %v256 = vadd.f32 %v116, %v255
    %257 = vmatmul.bf16.gmra.mxu0 %v157
    %v258 = vpop.f32.mrf.mxu0
    %v259 = vadd.f32 %v116, %v258
    %v260 = vpop.f32.mrf.mxu0
    %v261 = vadd.f32 %v116, %v260
    %262 = vdwg.mxu0
    %v263 = vmul.f32 %v224, 0.5
    %v264 = vmul.f32 %v226, 0.5
    %v265 = vmul.f32 %v229, 0.5
    %v266 = vmul.f32 %v231, 0.5
    %v267 = vmul.f32 %v234, 0.5
    %v268 = vmul.f32 %v236, 0.5
    %v269 = vmul.f32 %v239, 0.5
    %v270 = vmul.f32 %v241, 0.5
    %v271 = vmul.f32 %v244, 0.5
    %v272 = vmul.f32 %v246, 0.5
    %v273 = vmul.f32 %v249, 0.5
    %v274 = vmul.f32 %v251, 0.5
    %v275 = vmul.f32 %v254, 0.5
    %v276 = vmul.f32 %v256, 0.5
    %v277 = vmul.f32 %v259, 0.5
    %v278 = vmul.f32 %v261, 0.5
    %v279 = vmul.f32 %v224, 0.70710677
    %v280 = vmul.f32 %v226, 0.70710677
    %v281 = vmul.f32 %v229, 0.70710677
    %v282 = vmul.f32 %v231, 0.70710677
    %v283 = vmul.f32 %v234, 0.70710677
    %v284 = vmul.f32 %v236, 0.70710677
    %v285 = vmul.f32 %v239, 0.70710677
    %v286 = vmul.f32 %v241, 0.70710677
    %v287 = vmul.f32 %v244, 0.70710677
    %v288 = vmul.f32 %v246, 0.70710677
    %v289 = vmul.f32 %v249, 0.70710677
    %v290 = vmul.f32 %v251, 0.70710677
    %v291 = vmul.f32 %v254, 0.70710677
    %v292 = vmul.f32 %v256, 0.70710677
    %v293 = vmul.f32 %v259, 0.70710677
    %v294 = vmul.f32 %v261, 0.70710677
    %v295 = vmul.f32 %v279, %v279
    %v296 = vmin.f32 16.0, %v295
    %v297 = vmul.f32 %v296, 2.1237322e-06
    %v298 = vadd.f32 %v297, 0.00028619796
    %v299 = vmul.f32 %v296, %v298
    %v300 = vadd.f32 %v299, 0.0036580483
    %v301 = vmul.f32 %v296, %v300
    %v302 = vadd.f32 %v301, 0.05243302
    %v303 = vmul.f32 %v296, %v302
    %v304 = vadd.f32 %v303, 0.18741608
    %v305 = vmul.f32 %v296, %v304
    %v306 = vadd.f32 %v305, 1.1283791
    %v307 = vmul.f32 %v279, %v306
    %v308 = vmul.f32 %v296, 3.8918573e-05
    %v309 = vadd.f32 %v308, 0.001143296
    %v310 = vmul.f32 %v296, %v309
    %v311 = vadd.f32 %v310, 0.014752088
    %v312 = vmul.f32 %v296, %v311
    %v313 = vadd.f32 %v312, 0.112945676
    %v314 = vmul.f32 %v296, %v313
    %v315 = vadd.f32 %v314, 0.4994258
    %v316 = vmul.f32 %v296, %v315
    %v317 = vadd.f32 %v316, 1.0
    %v318 = vrcp.pop %v317
    %v319 = vmul.f32 %v317, %v318
    %v320 = vsub.f32 1.0, %v319
    %v321 = vmul.f32 %v318, %v320
    %v322 = vadd.f32 %v318, %v321
    %vm323 = vweird.f32 %v317
    %vm324 = vweird.f32 %v318
    %vm325 = vmor %vm323, %vm324
    %v326 = vsel %vm325, %v318, %v322
    %v327 = vand.u32 2147483647, %v317
    %vm328 = vcmp.eq.f32.partialorder %v327, 8.507059e+37
    %v329 = vand.u32 %v317, 2147483648
    %v330 = vor.u32 1.1754944e-38, %v329
    %v331 = vsel %vm328, %v330, %v326
    %v332 = vmul.f32 %v307, %v331
    %v333 = vmin.f32 %v332, 1.0
    %v334 = vmax.f32 %v333, -1.0
    %v335 = vmul.f32 %v280, %v280
    %v336 = vmin.f32 16.0, %v335
    %v337 = vmul.f32 %v336, 2.1237322e-06
    %v338 = vadd.f32 %v337, 0.00028619796
    %v339 = vmul.f32 %v336, %v338
    %v340 = vadd.f32 %v339, 0.0036580483
    %v341 = vmul.f32 %v336, %v340
    %v342 = vadd.f32 %v341, 0.05243302
    %v343 = vmul.f32 %v336, %v342
    %v344 = vadd.f32 %v343, 0.18741608
    %v345 = vmul.f32 %v336, %v344
    %v346 = vadd.f32 %v345, 1.1283791
    %v347 = vmul.f32 %v280, %v346
    %v348 = vmul.f32 %v336, 3.8918573e-05
    %v349 = vadd.f32 %v348, 0.001143296
    %v350 = vmul.f32 %v336, %v349
    %v351 = vadd.f32 %v350, 0.014752088
    %v352 = vmul.f32 %v336, %v351
    %v353 = vadd.f32 %v352, 0.112945676
    %v354 = vmul.f32 %v336, %v353
    %v355 = vadd.f32 %v354, 0.4994258
    %v356 = vmul.f32 %v336, %v355
    %v357 = vadd.f32 %v356, 1.0
    %v358 = vrcp.pop %v357
    %v359 = vmul.f32 %v357, %v358
    %v360 = vsub.f32 1.0, %v359
    %v361 = vmul.f32 %v358, %v360
    %v362 = vadd.f32 %v358, %v361
    %vm363 = vweird.f32 %v357
    %vm364 = vweird.f32 %v358
    %vm365 = vmor %vm363, %vm364
    %v366 = vsel %vm365, %v358, %v362
    %v367 = vand.u32 2147483647, %v357
    %vm368 = vcmp.eq.f32.partialorder %v367, 8.507059e+37
    %v369 = vand.u32 %v357, 2147483648
    %v370 = vor.u32 1.1754944e-38, %v369
    %v371 = vsel %vm368, %v370, %v366
    %v372 = vmul.f32 %v347, %v371
    %v373 = vmin.f32 %v372, 1.0
    %v374 = vmax.f32 %v373, -1.0
    %v375 = vmul.f32 %v281, %v281
    %v376 = vmin.f32 16.0, %v375
    %v377 = vmul.f32 %v376, 2.1237322e-06
    %v378 = vadd.f32 %v377, 0.00028619796
    %v379 = vmul.f32 %v376, %v378
    %v380 = vadd.f32 %v379, 0.0036580483
    %v381 = vmul.f32 %v376, %v380
    %v382 = vadd.f32 %v381, 0.05243302
    %v383 = vmul.f32 %v376, %v382
    %v384 = vadd.f32 %v383, 0.18741608
    %v385 = vmul.f32 %v376, %v384
    %v386 = vadd.f32 %v385, 1.1283791
    %v387 = vmul.f32 %v281, %v386
    %v388 = vmul.f32 %v376, 3.8918573e-05
    %v389 = vadd.f32 %v388, 0.001143296
    %v390 = vmul.f32 %v376, %v389
    %v391 = vadd.f32 %v390, 0.014752088
    %v392 = vmul.f32 %v376, %v391
    %v393 = vadd.f32 %v392, 0.112945676
    %v394 = vmul.f32 %v376, %v393
    %v395 = vadd.f32 %v394, 0.4994258
    %v396 = vmul.f32 %v376, %v395
    %v397 = vadd.f32 %v396, 1.0
    %v398 = vrcp.pop %v397
    %v399 = vmul.f32 %v397, %v398
    %v400 = vsub.f32 1.0, %v399
    %v401 = vmul.f32 %v398, %v400
    %v402 = vadd.f32 %v398, %v401
    %vm403 = vweird.f32 %v397
    %vm404 = vweird.f32 %v398
    %vm405 = vmor %vm403, %vm404
    %v406 = vsel %vm405, %v398, %v402
    %v407 = vand.u32 2147483647, %v397
    %vm408 = vcmp.eq.f32.partialorder %v407, 8.507059e+37
    %v409 = vand.u32 %v397, 2147483648
    %v410 = vor.u32 1.1754944e-38, %v409
    %v411 = vsel %vm408, %v410, %v406
    %v412 = vmul.f32 %v387, %v411
    %v413 = vmin.f32 %v412, 1.0
    %v414 = vmax.f32 %v413, -1.0
    %v415 = vmul.f32 %v282, %v282
    %v416 = vmin.f32 16.0, %v415
    %v417 = vmul.f32 %v416, 2.1237322e-06
    %v418 = vadd.f32 %v417, 0.00028619796
    %v419 = vmul.f32 %v416, %v418
    %v420 = vadd.f32 %v419, 0.0036580483
    %v421 = vmul.f32 %v416, %v420
    %v422 = vadd.f32 %v421, 0.05243302
    %v423 = vmul.f32 %v416, %v422
    %v424 = vadd.f32 %v423, 0.18741608
    %v425 = vmul.f32 %v416, %v424
    %v426 = vadd.f32 %v425, 1.1283791
    %v427 = vmul.f32 %v282, %v426
    %v428 = vmul.f32 %v416, 3.8918573e-05
    %v429 = vadd.f32 %v428, 0.001143296
    %v430 = vmul.f32 %v416, %v429
    %v431 = vadd.f32 %v430, 0.014752088
    %v432 = vmul.f32 %v416, %v431
    %v433 = vadd.f32 %v432, 0.112945676
    %v434 = vmul.f32 %v416, %v433
    %v435 = vadd.f32 %v434, 0.4994258
    %v436 = vmul.f32 %v416, %v435
    %v437 = vadd.f32 %v436, 1.0
    %v438 = vrcp.pop %v437
    %v439 = vmul.f32 %v437, %v438
    %v440 = vsub.f32 1.0, %v439
    %v441 = vmul.f32 %v438, %v440
    %v442 = vadd.f32 %v438, %v441
    %vm443 = vweird.f32 %v437
    %vm444 = vweird.f32 %v438
    %vm445 = vmor %vm443, %vm444
    %v446 = vsel %vm445, %v438, %v442
    %v447 = vand.u32 2147483647, %v437
    %vm448 = vcmp.eq.f32.partialorder %v447, 8.507059e+37
    %v449 = vand.u32 %v437, 2147483648
    %v450 = vor.u32 1.1754944e-38, %v449
    %v451 = vsel %vm448, %v450, %v446
    %v452 = vmul.f32 %v427, %v451
    %v453 = vmin.f32 %v452, 1.0
    %v454 = vmax.f32 %v453, -1.0
    %v455 = vmul.f32 %v283, %v283
    %v456 = vmin.f32 16.0, %v455
    %v457 = vmul.f32 %v456, 2.1237322e-06
    %v458 = vadd.f32 %v457, 0.00028619796
    %v459 = vmul.f32 %v456, %v458
    %v460 = vadd.f32 %v459, 0.0036580483
    %v461 = vmul.f32 %v456, %v460
    %v462 = vadd.f32 %v461, 0.05243302
    %v463 = vmul.f32 %v456, %v462
    %v464 = vadd.f32 %v463, 0.18741608
    %v465 = vmul.f32 %v456, %v464
    %v466 = vadd.f32 %v465, 1.1283791
    %v467 = vmul.f32 %v283, %v466
    %v468 = vmul.f32 %v456, 3.8918573e-05
    %v469 = vadd.f32 %v468, 0.001143296
    %v470 = vmul.f32 %v456, %v469
    %v471 = vadd.f32 %v470, 0.014752088
    %v472 = vmul.f32 %v456, %v471
    %v473 = vadd.f32 %v472, 0.112945676
    %v474 = vmul.f32 %v456, %v473
    %v475 = vadd.f32 %v474, 0.4994258
    %v476 = vmul.f32 %v456, %v475
    %v477 = vadd.f32 %v476, 1.0
    %v478 = vrcp.pop %v477
    %v479 = vmul.f32 %v477, %v478
    %v480 = vsub.f32 1.0, %v479
    %v481 = vmul.f32 %v478, %v480
    %v482 = vadd.f32 %v478, %v481
    %vm483 = vweird.f32 %v477
    %vm484 = vweird.f32 %v478
    %vm485 = vmor %vm483, %vm484
    %v486 = vsel %vm485, %v478, %v482
    %v487 = vand.u32 2147483647, %v477
    %vm488 = vcmp.eq.f32.partialorder %v487, 8.507059e+37
    %v489 = vand.u32 %v477, 2147483648
    %v490 = vor.u32 1.1754944e-38, %v489
    %v491 = vsel %vm488, %v490, %v486
    %v492 = vmul.f32 %v467, %v491
    %v493 = vmin.f32 %v492, 1.0
    %v494 = vmax.f32 %v493, -1.0
    %v495 = vmul.f32 %v284, %v284
    %v496 = vmin.f32 16.0, %v495
    %v497 = vmul.f32 %v496, 2.1237322e-06
    %v498 = vadd.f32 %v497, 0.00028619796
    %v499 = vmul.f32 %v496, %v498
    %v500 = vadd.f32 %v499, 0.0036580483
    %v501 = vmul.f32 %v496, %v500
    %v502 = vadd.f32 %v501, 0.05243302
    %v503 = vmul.f32 %v496, %v502
    %v504 = vadd.f32 %v503, 0.18741608
    %v505 = vmul.f32 %v496, %v504
    %v506 = vadd.f32 %v505, 1.1283791
    %v507 = vmul.f32 %v284, %v506
    %v508 = vmul.f32 %v496, 3.8918573e-05
    %v509 = vadd.f32 %v508, 0.001143296
    %v510 = vmul.f32 %v496, %v509
    %v511 = vadd.f32 %v510, 0.014752088
    %v512 = vmul.f32 %v496, %v511
    %v513 = vadd.f32 %v512, 0.112945676
    %v514 = vmul.f32 %v496, %v513
    %v515 = vadd.f32 %v514, 0.4994258
    %v516 = vmul.f32 %v496, %v515
    %v517 = vadd.f32 %v516, 1.0
    %v518 = vrcp.pop %v517
    %v519 = vmul.f32 %v517, %v518
    %v520 = vsub.f32 1.0, %v519
    %v521 = vmul.f32 %v518, %v520
    %v522 = vadd.f32 %v518, %v521
    %vm523 = vweird.f32 %v517
    %vm524 = vweird.f32 %v518
    %vm525 = vmor %vm523, %vm524
    %v526 = vsel %vm525, %v518, %v522
    %v527 = vand.u32 2147483647, %v517
    %vm528 = vcmp.eq.f32.partialorder %v527, 8.507059e+37
    %v529 = vand.u32 %v517, 2147483648
    %v530 = vor.u32 1.1754944e-38, %v529
    %v531 = vsel %vm528, %v530, %v526
    %v532 = vmul.f32 %v507, %v531
    %v533 = vmin.f32 %v532, 1.0
    %v534 = vmax.f32 %v533, -1.0
    %v535 = vmul.f32 %v285, %v285
    %v536 = vmin.f32 16.0, %v535
    %v537 = vmul.f32 %v536, 2.1237322e-06
    %v538 = vadd.f32 %v537, 0.00028619796
    %v539 = vmul.f32 %v536, %v538
    %v540 = vadd.f32 %v539, 0.0036580483
    %v541 = vmul.f32 %v536, %v540
    %v542 = vadd.f32 %v541, 0.05243302
    %v543 = vmul.f32 %v536, %v542
    %v544 = vadd.f32 %v543, 0.18741608
    %v545 = vmul.f32 %v536, %v544
    %v546 = vadd.f32 %v545, 1.1283791
    %v547 = vmul.f32 %v285, %v546
    %v548 = vmul.f32 %v536, 3.8918573e-05
    %v549 = vadd.f32 %v548, 0.001143296
    %v550 = vmul.f32 %v536, %v549
    %v551 = vadd.f32 %v550, 0.014752088
    %v552 = vmul.f32 %v536, %v551
    %v553 = vadd.f32 %v552, 0.112945676
    %v554 = vmul.f32 %v536, %v553
    %v555 = vadd.f32 %v554, 0.4994258
    %v556 = vmul.f32 %v536, %v555
    %v557 = vadd.f32 %v556, 1.0
    %v558 = vrcp.pop %v557
    %v559 = vmul.f32 %v557, %v558
    %v560 = vsub.f32 1.0, %v559
    %v561 = vmul.f32 %v558, %v560
    %v562 = vadd.f32 %v558, %v561
    %vm563 = vweird.f32 %v557
    %vm564 = vweird.f32 %v558
    %vm565 = vmor %vm563, %vm564
    %v566 = vsel %vm565, %v558, %v562
    %v567 = vand.u32 2147483647, %v557
    %vm568 = vcmp.eq.f32.partialorder %v567, 8.507059e+37
    %v569 = vand.u32 %v557, 2147483648
    %v570 = vor.u32 1.1754944e-38, %v569
    %v571 = vsel %vm568, %v570, %v566
    %v572 = vmul.f32 %v547, %v571
    %v573 = vmin.f32 %v572, 1.0
    %v574 = vmax.f32 %v573, -1.0
    %v575 = vmul.f32 %v286, %v286
    %v576 = vmin.f32 16.0, %v575
    %v577 = vmul.f32 %v576, 2.1237322e-06
    %v578 = vadd.f32 %v577, 0.00028619796
    %v579 = vmul.f32 %v576, %v578
    %v580 = vadd.f32 %v579, 0.0036580483
    %v581 = vmul.f32 %v576, %v580
    %v582 = vadd.f32 %v581, 0.05243302
    %v583 = vmul.f32 %v576, %v582
    %v584 = vadd.f32 %v583, 0.18741608
    %v585 = vmul.f32 %v576, %v584
    %v586 = vadd.f32 %v585, 1.1283791
    %v587 = vmul.f32 %v286, %v586
    %v588 = vmul.f32 %v576, 3.8918573e-05
    %v589 = vadd.f32 %v588, 0.001143296
    %v590 = vmul.f32 %v576, %v589
    %v591 = vadd.f32 %v590, 0.014752088
    %v592 = vmul.f32 %v576, %v591
    %v593 = vadd.f32 %v592, 0.112945676
    %v594 = vmul.f32 %v576, %v593
    %v595 = vadd.f32 %v594, 0.4994258
    %v596 = vmul.f32 %v576, %v595
    %v597 = vadd.f32 %v596, 1.0
    %v598 = vrcp.pop %v597
    %v599 = vmul.f32 %v597, %v598
    %v600 = vsub.f32 1.0, %v599
    %v601 = vmul.f32 %v598, %v600
    %v602 = vadd.f32 %v598, %v601
    %vm603 = vweird.f32 %v597
    %vm604 = vweird.f32 %v598
    %vm605 = vmor %vm603, %vm604
    %v606 = vsel %vm605, %v598, %v602
    %v607 = vand.u32 2147483647, %v597
    %vm608 = vcmp.eq.f32.partialorder %v607, 8.507059e+37
    %v609 = vand.u32 %v597, 2147483648
    %v610 = vor.u32 1.1754944e-38, %v609
    %v611 = vsel %vm608, %v610, %v606
    %v612 = vmul.f32 %v587, %v611
    %v613 = vmin.f32 %v612, 1.0
    %v614 = vmax.f32 %v613, -1.0
    %v615 = vmul.f32 %v287, %v287
    %v616 = vmin.f32 16.0, %v615
    %v617 = vmul.f32 %v616, 2.1237322e-06
    %v618 = vadd.f32 %v617, 0.00028619796
    %v619 = vmul.f32 %v616, %v618
    %v620 = vadd.f32 %v619, 0.0036580483
    %v621 = vmul.f32 %v616, %v620
    %v622 = vadd.f32 %v621, 0.05243302
    %v623 = vmul.f32 %v616, %v622
    %v624 = vadd.f32 %v623, 0.18741608
    %v625 = vmul.f32 %v616, %v624
    %v626 = vadd.f32 %v625, 1.1283791
    %v627 = vmul.f32 %v287, %v626
    %v628 = vmul.f32 %v616, 3.8918573e-05
    %v629 = vadd.f32 %v628, 0.001143296
    %v630 = vmul.f32 %v616, %v629
    %v631 = vadd.f32 %v630, 0.014752088
    %v632 = vmul.f32 %v616, %v631
    %v633 = vadd.f32 %v632, 0.112945676
    %v634 = vmul.f32 %v616, %v633
    %v635 = vadd.f32 %v634, 0.4994258
    %v636 = vmul.f32 %v616, %v635
    %v637 = vadd.f32 %v636, 1.0
    %v638 = vrcp.pop %v637
    %v639 = vmul.f32 %v637, %v638
    %v640 = vsub.f32 1.0, %v639
    %v641 = vmul.f32 %v638, %v640
    %v642 = vadd.f32 %v638, %v641
    %vm643 = vweird.f32 %v637
    %vm644 = vweird.f32 %v638
    %vm645 = vmor %vm643, %vm644
    %v646 = vsel %vm645, %v638, %v642
    %v647 = vand.u32 2147483647, %v637
    %vm648 = vcmp.eq.f32.partialorder %v647, 8.507059e+37
    %v649 = vand.u32 %v637, 2147483648
    %v650 = vor.u32 1.1754944e-38, %v649
    %v651 = vsel %vm648, %v650, %v646
    %v652 = vmul.f32 %v627, %v651
    %v653 = vmin.f32 %v652, 1.0
    %v654 = vmax.f32 %v653, -1.0
    %v655 = vmul.f32 %v288, %v288
    %v656 = vmin.f32 16.0, %v655
    %v657 = vmul.f32 %v656, 2.1237322e-06
    %v658 = vadd.f32 %v657, 0.00028619796
    %v659 = vmul.f32 %v656, %v658
    %v660 = vadd.f32 %v659, 0.0036580483
    %v661 = vmul.f32 %v656, %v660
    %v662 = vadd.f32 %v661, 0.05243302
    %v663 = vmul.f32 %v656, %v662
    %v664 = vadd.f32 %v663, 0.18741608
    %v665 = vmul.f32 %v656, %v664
    %v666 = vadd.f32 %v665, 1.1283791
    %v667 = vmul.f32 %v288, %v666
    %v668 = vmul.f32 %v656, 3.8918573e-05
    %v669 = vadd.f32 %v668, 0.001143296
    %v670 = vmul.f32 %v656, %v669
    %v671 = vadd.f32 %v670, 0.014752088
    %v672 = vmul.f32 %v656, %v671
    %v673 = vadd.f32 %v672, 0.112945676
    %v674 = vmul.f32 %v656, %v673
    %v675 = vadd.f32 %v674, 0.4994258
    %v676 = vmul.f32 %v656, %v675
    %v677 = vadd.f32 %v676, 1.0
    %v678 = vrcp.pop %v677
    %v679 = vmul.f32 %v677, %v678
    %v680 = vsub.f32 1.0, %v679
    %v681 = vmul.f32 %v678, %v680
    %v682 = vadd.f32 %v678, %v681
    %vm683 = vweird.f32 %v677
    %vm684 = vweird.f32 %v678
    %vm685 = vmor %vm683, %vm684
    %v686 = vsel %vm685, %v678, %v682
    %v687 = vand.u32 2147483647, %v677
    %vm688 = vcmp.eq.f32.partialorder %v687, 8.507059e+37
    %v689 = vand.u32 %v677, 2147483648
    %v690 = vor.u32 1.1754944e-38, %v689
    %v691 = vsel %vm688, %v690, %v686
    %v692 = vmul.f32 %v667, %v691
    %v693 = vmin.f32 %v692, 1.0
    %v694 = vmax.f32 %v693, -1.0
    %v695 = vmul.f32 %v289, %v289
    %v696 = vmin.f32 16.0, %v695
    %v697 = vmul.f32 %v696, 2.1237322e-06
    %v698 = vadd.f32 %v697, 0.00028619796
    %v699 = vmul.f32 %v696, %v698
    %v700 = vadd.f32 %v699, 0.0036580483
    %v701 = vmul.f32 %v696, %v700
    %v702 = vadd.f32 %v701, 0.05243302
    %v703 = vmul.f32 %v696, %v702
    %v704 = vadd.f32 %v703, 0.18741608
    %v705 = vmul.f32 %v696, %v704
    %v706 = vadd.f32 %v705, 1.1283791
    %v707 = vmul.f32 %v289, %v706
    %v708 = vmul.f32 %v696, 3.8918573e-05
    %v709 = vadd.f32 %v708, 0.001143296
    %v710 = vmul.f32 %v696, %v709
    %v711 = vadd.f32 %v710, 0.014752088
    %v712 = vmul.f32 %v696, %v711
    %v713 = vadd.f32 %v712, 0.112945676
    %v714 = vmul.f32 %v696, %v713
    %v715 = vadd.f32 %v714, 0.4994258
    %v716 = vmul.f32 %v696, %v715
    %v717 = vadd.f32 %v716, 1.0
    %v718 = vrcp.pop %v717
    %v719 = vmul.f32 %v717, %v718
    %v720 = vsub.f32 1.0, %v719
    %v721 = vmul.f32 %v718, %v720
    %v722 = vadd.f32 %v718, %v721
    %vm723 = vweird.f32 %v717
    %vm724 = vweird.f32 %v718
    %vm725 = vmor %vm723, %vm724
    %v726 = vsel %vm725, %v718, %v722
    %v727 = vand.u32 2147483647, %v717
    %vm728 = vcmp.eq.f32.partialorder %v727, 8.507059e+37
    %v729 = vand.u32 %v717, 2147483648
    %v730 = vor.u32 1.1754944e-38, %v729
    %v731 = vsel %vm728, %v730, %v726
    %v732 = vmul.f32 %v707, %v731
    %v733 = vmin.f32 %v732, 1.0
    %v734 = vmax.f32 %v733, -1.0
    %v735 = vmul.f32 %v290, %v290
    %v736 = vmin.f32 16.0, %v735
    %v737 = vmul.f32 %v736, 2.1237322e-06
    %v738 = vadd.f32 %v737, 0.00028619796
    %v739 = vmul.f32 %v736, %v738
    %v740 = vadd.f32 %v739, 0.0036580483
    %v741 = vmul.f32 %v736, %v740
    %v742 = vadd.f32 %v741, 0.05243302
    %v743 = vmul.f32 %v736, %v742
    %v744 = vadd.f32 %v743, 0.18741608
    %v745 = vmul.f32 %v736, %v744
    %v746 = vadd.f32 %v745, 1.1283791
    %v747 = vmul.f32 %v290, %v746
    %v748 = vmul.f32 %v736, 3.8918573e-05
    %v749 = vadd.f32 %v748, 0.001143296
    %v750 = vmul.f32 %v736, %v749
    %v751 = vadd.f32 %v750, 0.014752088
    %v752 = vmul.f32 %v736, %v751
    %v753 = vadd.f32 %v752, 0.112945676
    %v754 = vmul.f32 %v736, %v753
    %v755 = vadd.f32 %v754, 0.4994258
    %v756 = vmul.f32 %v736, %v755
    %v757 = vadd.f32 %v756, 1.0
    %v758 = vrcp.pop %v757
    %v759 = vmul.f32 %v757, %v758
    %v760 = vsub.f32 1.0, %v759
    %v761 = vmul.f32 %v758, %v760
    %v762 = vadd.f32 %v758, %v761
    %vm763 = vweird.f32 %v757
    %vm764 = vweird.f32 %v758
    %vm765 = vmor %vm763, %vm764
    %v766 = vsel %vm765, %v758, %v762
    %v767 = vand.u32 2147483647, %v757
    %vm768 = vcmp.eq.f32.partialorder %v767, 8.507059e+37
    %v769 = vand.u32 %v757, 2147483648
    %v770 = vor.u32 1.1754944e-38, %v769
    %v771 = vsel %vm768, %v770, %v766
    %v772 = vmul.f32 %v747, %v771
    %v773 = vmin.f32 %v772, 1.0
    %v774 = vmax.f32 %v773, -1.0
    %v775 = vmul.f32 %v291, %v291
    %v776 = vmin.f32 16.0, %v775
    %v777 = vmul.f32 %v776, 2.1237322e-06
    %v778 = vadd.f32 %v777, 0.00028619796
    %v779 = vmul.f32 %v776, %v778
    %v780 = vadd.f32 %v779, 0.0036580483
    %v781 = vmul.f32 %v776, %v780
    %v782 = vadd.f32 %v781, 0.05243302
    %v783 = vmul.f32 %v776, %v782
    %v784 = vadd.f32 %v783, 0.18741608
    %v785 = vmul.f32 %v776, %v784
    %v786 = vadd.f32 %v785, 1.1283791
    %v787 = vmul.f32 %v291, %v786
    %v788 = vmul.f32 %v776, 3.8918573e-05
    %v789 = vadd.f32 %v788, 0.001143296
    %v790 = vmul.f32 %v776, %v789
    %v791 = vadd.f32 %v790, 0.014752088
    %v792 = vmul.f32 %v776, %v791
    %v793 = vadd.f32 %v792, 0.112945676
    %v794 = vmul.f32 %v776, %v793
    %v795 = vadd.f32 %v794, 0.4994258
    %v796 = vmul.f32 %v776, %v795
    %v797 = vadd.f32 %v796, 1.0
    %v798 = vrcp.pop %v797
    %v799 = vmul.f32 %v797, %v798
    %v800 = vsub.f32 1.0, %v799
    %v801 = vmul.f32 %v798, %v800
    %v802 = vadd.f32 %v798, %v801
    %vm803 = vweird.f32 %v797
    %vm804 = vweird.f32 %v798
    %vm805 = vmor %vm803, %vm804
    %v806 = vsel %vm805, %v798, %v802
    %v807 = vand.u32 2147483647, %v797
    %vm808 = vcmp.eq.f32.partialorder %v807, 8.507059e+37
    %v809 = vand.u32 %v797, 2147483648
    %v810 = vor.u32 1.1754944e-38, %v809
    %v811 = vsel %vm808, %v810, %v806
    %v812 = vmul.f32 %v787, %v811
    %v813 = vmin.f32 %v812, 1.0
    %v814 = vmax.f32 %v813, -1.0
    %v815 = vmul.f32 %v292, %v292
    %v816 = vmin.f32 16.0, %v815
    %v817 = vmul.f32 %v816, 2.1237322e-06
    %v818 = vadd.f32 %v817, 0.00028619796
    %v819 = vmul.f32 %v816, %v818
    %v820 = vadd.f32 %v819, 0.0036580483
    %v821 = vmul.f32 %v816, %v820
    %v822 = vadd.f32 %v821, 0.05243302
    %v823 = vmul.f32 %v816, %v822
    %v824 = vadd.f32 %v823, 0.18741608
    %v825 = vmul.f32 %v816, %v824
    %v826 = vadd.f32 %v825, 1.1283791
    %v827 = vmul.f32 %v292, %v826
    %v828 = vmul.f32 %v816, 3.8918573e-05
    %v829 = vadd.f32 %v828, 0.001143296
    %v830 = vmul.f32 %v816, %v829
    %v831 = vadd.f32 %v830, 0.014752088
    %v832 = vmul.f32 %v816, %v831
    %v833 = vadd.f32 %v832, 0.112945676
    %v834 = vmul.f32 %v816, %v833
    %v835 = vadd.f32 %v834, 0.4994258
    %v836 = vmul.f32 %v816, %v835
    %v837 = vadd.f32 %v836, 1.0
    %v838 = vrcp.pop %v837
    %v839 = vmul.f32 %v837, %v838
    %v840 = vsub.f32 1.0, %v839
    %v841 = vmul.f32 %v838, %v840
    %v842 = vadd.f32 %v838, %v841
    %vm843 = vweird.f32 %v837
    %vm844 = vweird.f32 %v838
    %vm845 = vmor %vm843, %vm844
    %v846 = vsel %vm845, %v838, %v842
    %v847 = vand.u32 2147483647, %v837
    %vm848 = vcmp.eq.f32.partialorder %v847, 8.507059e+37
    %v849 = vand.u32 %v837, 2147483648
    %v850 = vor.u32 1.1754944e-38, %v849
    %v851 = vsel %vm848, %v850, %v846
    %v852 = vmul.f32 %v827, %v851
    %v853 = vmin.f32 %v852, 1.0
    %v854 = vmax.f32 %v853, -1.0
    %v855 = vmul.f32 %v293, %v293
    %v856 = vmin.f32 16.0, %v855
    %v857 = vmul.f32 %v856, 2.1237322e-06
    %v858 = vadd.f32 %v857, 0.00028619796
    %v859 = vmul.f32 %v856, %v858
    %v860 = vadd.f32 %v859, 0.0036580483
    %v861 = vmul.f32 %v856, %v860
    %v862 = vadd.f32 %v861, 0.05243302
    %v863 = vmul.f32 %v856, %v862
    %v864 = vadd.f32 %v863, 0.18741608
    %v865 = vmul.f32 %v856, %v864
    %v866 = vadd.f32 %v865, 1.1283791
    %v867 = vmul.f32 %v293, %v866
    %v868 = vmul.f32 %v856, 3.8918573e-05
    %v869 = vadd.f32 %v868, 0.001143296
    %v870 = vmul.f32 %v856, %v869
    %v871 = vadd.f32 %v870, 0.014752088
    %v872 = vmul.f32 %v856, %v871
    %v873 = vadd.f32 %v872, 0.112945676
    %v874 = vmul.f32 %v856, %v873
    %v875 = vadd.f32 %v874, 0.4994258
    %v876 = vmul.f32 %v856, %v875
    %v877 = vadd.f32 %v876, 1.0
    %v878 = vrcp.pop %v877
    %v879 = vmul.f32 %v877, %v878
    %v880 = vsub.f32 1.0, %v879
    %v881 = vmul.f32 %v878, %v880
    %v882 = vadd.f32 %v878, %v881
    %vm883 = vweird.f32 %v877
    %vm884 = vweird.f32 %v878
    %vm885 = vmor %vm883, %vm884
    %v886 = vsel %vm885, %v878, %v882
    %v887 = vand.u32 2147483647, %v877
    %vm888 = vcmp.eq.f32.partialorder %v887, 8.507059e+37
    %v889 = vand.u32 %v877, 2147483648
    %v890 = vor.u32 1.1754944e-38, %v889
    %v891 = vsel %vm888, %v890, %v886
    %v892 = vmul.f32 %v867, %v891
    %v893 = vmin.f32 %v892, 1.0
    %v894 = vmax.f32 %v893, -1.0
    %v895 = vmul.f32 %v294, %v294
    %v896 = vmin.f32 16.0, %v895
    %v897 = vmul.f32 %v896, 2.1237322e-06
    %v898 = vadd.f32 %v897, 0.00028619796
    %v899 = vmul.f32 %v896, %v898
    %v900 = vadd.f32 %v899, 0.0036580483
    %v901 = vmul.f32 %v896, %v900
    %v902 = vadd.f32 %v901, 0.05243302
    %v903 = vmul.f32 %v896, %v902
    %v904 = vadd.f32 %v903, 0.18741608
    %v905 = vmul.f32 %v896, %v904
    %v906 = vadd.f32 %v905, 1.1283791
    %v907 = vmul.f32 %v294, %v906
    %v908 = vmul.f32 %v896, 3.8918573e-05
    %v909 = vadd.f32 %v908, 0.001143296
    %v910 = vmul.f32 %v896, %v909
    %v911 = vadd.f32 %v910, 0.014752088
    %v912 = vmul.f32 %v896, %v911
    %v913 = vadd.f32 %v912, 0.112945676
    %v914 = vmul.f32 %v896, %v913
    %v915 = vadd.f32 %v914, 0.4994258
    %v916 = vmul.f32 %v896, %v915
    %v917 = vadd.f32 %v916, 1.0
    %v918 = vrcp.pop %v917
    %v919 = vmul.f32 %v917, %v918
    %v920 = vsub.f32 1.0, %v919
    %v921 = vmul.f32 %v918, %v920
    %v922 = vadd.f32 %v918, %v921
    %vm923 = vweird.f32 %v917
    %vm924 = vweird.f32 %v918
    %vm925 = vmor %vm923, %vm924
    %v926 = vsel %vm925, %v918, %v922
    %v927 = vand.u32 2147483647, %v917
    %vm928 = vcmp.eq.f32.partialorder %v927, 8.507059e+37
    %v929 = vand.u32 %v917, 2147483648
    %v930 = vor.u32 1.1754944e-38, %v929
    %v931 = vsel %vm928, %v930, %v926
    %v932 = vmul.f32 %v907, %v931
    %v933 = vmin.f32 %v932, 1.0
    %v934 = vmax.f32 %v933, -1.0
    %v935 = vadd.f32 %v334, 1.0
    %v936 = vadd.f32 %v374, 1.0
    %v937 = vadd.f32 %v414, 1.0
    %v938 = vadd.f32 %v454, 1.0
    %v939 = vadd.f32 %v494, 1.0
    %v940 = vadd.f32 %v534, 1.0
    %v941 = vadd.f32 %v574, 1.0
    %v942 = vadd.f32 %v614, 1.0
    %v943 = vadd.f32 %v654, 1.0
    %v944 = vadd.f32 %v694, 1.0
    %v945 = vadd.f32 %v734, 1.0
    %v946 = vadd.f32 %v774, 1.0
    %v947 = vadd.f32 %v814, 1.0
    %v948 = vadd.f32 %v854, 1.0
    %v949 = vadd.f32 %v894, 1.0
    %v950 = vadd.f32 %v934, 1.0
    %v951 = vmul.f32 %v263, %v935
    %v952 = vmul.f32 %v264, %v936
    %v953 = vmul.f32 %v265, %v937
    %v954 = vmul.f32 %v266, %v938
    %v955 = vmul.f32 %v267, %v939
    %v956 = vmul.f32 %v268, %v940
    %v957 = vmul.f32 %v269, %v941
    %v958 = vmul.f32 %v270, %v942
    %v959 = vmul.f32 %v271, %v943
    %v960 = vmul.f32 %v272, %v944
    %v961 = vmul.f32 %v273, %v945
    %v962 = vmul.f32 %v274, %v946
    %v963 = vmul.f32 %v275, %v947
    %v964 = vmul.f32 %v276, %v948
    %v965 = vmul.f32 %v277, %v949
    %v966 = vmul.f32 %v278, %v950
    %v967 = vlaneseq
    %v968 = vand.u32 %v967, 127
    %vm969 = vcmp.lt.s32.totalorder %v968, 64
    %v970 = vsel %vm969, 1, 0
    %v971 = vcvt.s32.f32 %v970
    %v972 = vmul.f32 %v951, %v971
    %v973 = vmul.f32 %v952, %v971
    %v974 = vmul.f32 %v953, %v971
    %v975 = vmul.f32 %v954, %v971
    %v976 = vmul.f32 %v955, %v971
    %v977 = vmul.f32 %v956, %v971
    %v978 = vmul.f32 %v957, %v971
    %v979 = vmul.f32 %v958, %v971
    %v980 = vmul.f32 %v959, %v971
    %v981 = vmul.f32 %v960, %v971
    %v982 = vmul.f32 %v961, %v971
    %v983 = vmul.f32 %v962, %v971
    %v984 = vmul.f32 %v963, %v971
    %v985 = vmul.f32 %v964, %v971
    %v986 = vmul.f32 %v965, %v971
    %v987 = vmul.f32 %v966, %v971
    %988 = vadd.xlane.f32.xlu0 %v972
    %v989 = vpop.xlane.xlu0 %988
    %990 = vadd.xlane.f32.xlu0 %v973
    %v991 = vpop.xlane.xlu0 %990
    %992 = vadd.xlane.f32.xlu0 %v974
    %v993 = vpop.xlane.xlu0 %992
    %994 = vadd.xlane.f32.xlu0 %v975
    %v995 = vpop.xlane.xlu0 %994
    %996 = vadd.xlane.f32.xlu0 %v976
    %v997 = vpop.xlane.xlu0 %996
    %998 = vadd.xlane.f32.xlu0 %v977
    %v999 = vpop.xlane.xlu0 %998
    %1000 = vadd.xlane.f32.xlu0 %v978
    %v1001 = vpop.xlane.xlu0 %1000
    %1002 = vadd.xlane.f32.xlu0 %v979
    %v1003 = vpop.xlane.xlu0 %1002
    %1004 = vadd.xlane.f32.xlu0 %v980
    %v1005 = vpop.xlane.xlu0 %1004
    %1006 = vadd.xlane.f32.xlu0 %v981
    %v1007 = vpop.xlane.xlu0 %1006
    %1008 = vadd.xlane.f32.xlu0 %v982
    %v1009 = vpop.xlane.xlu0 %1008
    %1010 = vadd.xlane.f32.xlu0 %v983
    %v1011 = vpop.xlane.xlu0 %1010
    %1012 = vadd.xlane.f32.xlu0 %v984
    %v1013 = vpop.xlane.xlu0 %1012
    %1014 = vadd.xlane.f32.xlu0 %v985
    %v1015 = vpop.xlane.xlu0 %1014
    %1016 = vadd.xlane.f32.xlu0 %v986
    %v1017 = vpop.xlane.xlu0 %1016
    %1018 = vadd.xlane.f32.xlu0 %v987
    %v1019 = vpop.xlane.xlu0 %1018
    %v1020 = vmul.f32 %v989, 0.015625
    %v1021 = vmul.f32 %v991, 0.015625
    %v1022 = vmul.f32 %v993, 0.015625
    %v1023 = vmul.f32 %v995, 0.015625
    %v1024 = vmul.f32 %v997, 0.015625
    %v1025 = vmul.f32 %v999, 0.015625
    %v1026 = vmul.f32 %v1001, 0.015625
    %v1027 = vmul.f32 %v1003, 0.015625
    %v1028 = vmul.f32 %v1005, 0.015625
    %v1029 = vmul.f32 %v1007, 0.015625
    %v1030 = vmul.f32 %v1009, 0.015625
    %v1031 = vmul.f32 %v1011, 0.015625
    %v1032 = vmul.f32 %v1013, 0.015625
    %v1033 = vmul.f32 %v1015, 0.015625
    %v1034 = vmul.f32 %v1017, 0.015625
    %v1035 = vmul.f32 %v1019, 0.015625
    %v1036 = vsub.f32 %v951, %v1020
    %v1037 = vsub.f32 %v952, %v1021
    %v1038 = vsub.f32 %v953, %v1022
    %v1039 = vsub.f32 %v954, %v1023
    %v1040 = vsub.f32 %v955, %v1024
    %v1041 = vsub.f32 %v956, %v1025
    %v1042 = vsub.f32 %v957, %v1026
    %v1043 = vsub.f32 %v958, %v1027
    %v1044 = vsub.f32 %v959, %v1028
    %v1045 = vsub.f32 %v960, %v1029
    %v1046 = vsub.f32 %v961, %v1030
    %v1047 = vsub.f32 %v962, %v1031
    %v1048 = vsub.f32 %v963, %v1032
    %v1049 = vsub.f32 %v964, %v1033
    %v1050 = vsub.f32 %v965, %v1034
    %v1051 = vsub.f32 %v966, %v1035
    %v1052 = vmul.f32 %v1036, %v971
    %v1053 = vmul.f32 %v1037, %v971
    %v1054 = vmul.f32 %v1038, %v971
    %v1055 = vmul.f32 %v1039, %v971
    %v1056 = vmul.f32 %v1040, %v971
    %v1057 = vmul.f32 %v1041, %v971
    %v1058 = vmul.f32 %v1042, %v971
    %v1059 = vmul.f32 %v1043, %v971
    %v1060 = vmul.f32 %v1044, %v971
    %v1061 = vmul.f32 %v1045, %v971
    %v1062 = vmul.f32 %v1046, %v971
    %v1063 = vmul.f32 %v1047, %v971
    %v1064 = vmul.f32 %v1048, %v971
    %v1065 = vmul.f32 %v1049, %v971
    %v1066 = vmul.f32 %v1050, %v971
    %v1067 = vmul.f32 %v1051, %v971
    %v1068 = vmul.f32 %v1052, %v1052
    %v1069 = vmul.f32 %v1053, %v1053
    %v1070 = vmul.f32 %v1054, %v1054
    %v1071 = vmul.f32 %v1055, %v1055
    %v1072 = vmul.f32 %v1056, %v1056
    %v1073 = vmul.f32 %v1057, %v1057
    %v1074 = vmul.f32 %v1058, %v1058
    %v1075 = vmul.f32 %v1059, %v1059
    %v1076 = vmul.f32 %v1060, %v1060
    %v1077 = vmul.f32 %v1061, %v1061
    %v1078 = vmul.f32 %v1062, %v1062
    %v1079 = vmul.f32 %v1063, %v1063
    %v1080 = vmul.f32 %v1064, %v1064
    %v1081 = vmul.f32 %v1065, %v1065
    %v1082 = vmul.f32 %v1066, %v1066
    %v1083 = vmul.f32 %v1067, %v1067
    %1084 = vadd.xlane.f32.xlu0 %v1068
    %v1085 = vpop.xlane.xlu0 %1084
    %1086 = vadd.xlane.f32.xlu0 %v1069
    %v1087 = vpop.xlane.xlu0 %1086
    %1088 = vadd.xlane.f32.xlu0 %v1070
    %v1089 = vpop.xlane.xlu0 %1088
    %1090 = vadd.xlane.f32.xlu0 %v1071
    %v1091 = vpop.xlane.xlu0 %1090
    %1092 = vadd.xlane.f32.xlu0 %v1072
    %v1093 = vpop.xlane.xlu0 %1092
    %1094 = vadd.xlane.f32.xlu0 %v1073
    %v1095 = vpop.xlane.xlu0 %1094
    %1096 = vadd.xlane.f32.xlu0 %v1074
    %v1097 = vpop.xlane.xlu0 %1096
    %1098 = vadd.xlane.f32.xlu0 %v1075
    %v1099 = vpop.xlane.xlu0 %1098
    %1100 = vadd.xlane.f32.xlu0 %v1076
    %v1101 = vpop.xlane.xlu0 %1100
    %1102 = vadd.xlane.f32.xlu0 %v1077
    %v1103 = vpop.xlane.xlu0 %1102
    %1104 = vadd.xlane.f32.xlu0 %v1078
    %v1105 = vpop.xlane.xlu0 %1104
    %1106 = vadd.xlane.f32.xlu0 %v1079
    %v1107 = vpop.xlane.xlu0 %1106
    %1108 = vadd.xlane.f32.xlu0 %v1080
    %v1109 = vpop.xlane.xlu0 %1108
    %1110 = vadd.xlane.f32.xlu0 %v1081
    %v1111 = vpop.xlane.xlu0 %1110
    %1112 = vadd.xlane.f32.xlu0 %v1082
    %v1113 = vpop.xlane.xlu0 %1112
    %1114 = vadd.xlane.f32.xlu0 %v1083
    %v1115 = vpop.xlane.xlu0 %1114
    %v1116 = vmul.f32 %v1085, 0.015625
    %v1117 = vmul.f32 %v1087, 0.015625
    %v1118 = vmul.f32 %v1089, 0.015625
    %v1119 = vmul.f32 %v1091, 0.015625
    %v1120 = vmul.f32 %v1093, 0.015625
    %v1121 = vmul.f32 %v1095, 0.015625
    %v1122 = vmul.f32 %v1097, 0.015625
    %v1123 = vmul.f32 %v1099, 0.015625
    %v1124 = vmul.f32 %v1101, 0.015625
    %v1125 = vmul.f32 %v1103, 0.015625
    %v1126 = vmul.f32 %v1105, 0.015625
    %v1127 = vmul.f32 %v1107, 0.015625
    %v1128 = vmul.f32 %v1109, 0.015625
    %v1129 = vmul.f32 %v1111, 0.015625
    %v1130 = vmul.f32 %v1113, 0.015625
    %v1131 = vmul.f32 %v1115, 0.015625
    %v1132 = vadd.f32 %v1116, 1e-05
    %v1133 = vadd.f32 %v1117, 1e-05
    %v1134 = vadd.f32 %v1118, 1e-05
    %v1135 = vadd.f32 %v1119, 1e-05
    %v1136 = vadd.f32 %v1120, 1e-05
    %v1137 = vadd.f32 %v1121, 1e-05
    %v1138 = vadd.f32 %v1122, 1e-05
    %v1139 = vadd.f32 %v1123, 1e-05
    %v1140 = vadd.f32 %v1124, 1e-05
    %v1141 = vadd.f32 %v1125, 1e-05
    %v1142 = vadd.f32 %v1126, 1e-05
    %v1143 = vadd.f32 %v1127, 1e-05
    %v1144 = vadd.f32 %v1128, 1e-05
    %v1145 = vadd.f32 %v1129, 1e-05
    %v1146 = vadd.f32 %v1130, 1e-05
    %v1147 = vadd.f32 %v1131, 1e-05
    %v1148 = vrsqrt.pop %v1132
    %v1149 = vmul.f32 %v1148, %v1132
    %v1150 = vmul.f32 %v1149, %v1148
    %v1151 = vmul.f32 0.5, %v1150
    %v1152 = vsub.f32 1.5, %v1151
    %v1153 = vmul.f32 %v1148, %v1152
    %vm1154 = vweird.f32 %v1132
    %vm1155 = vweird.f32 %v1148
    %vm1156 = vmor %vm1154, %vm1155
    %v1157 = vsel %vm1156, %v1148, %v1153
    %v1158 = vrsqrt.pop %v1133
    %v1159 = vmul.f32 %v1158, %v1133
    %v1160 = vmul.f32 %v1159, %v1158
    %v1161 = vmul.f32 0.5, %v1160
    %v1162 = vsub.f32 1.5, %v1161
    %v1163 = vmul.f32 %v1158, %v1162
    %vm1164 = vweird.f32 %v1133
    %vm1165 = vweird.f32 %v1158
    %vm1166 = vmor %vm1164, %vm1165
    %v1167 = vsel %vm1166, %v1158, %v1163
    %v1168 = vrsqrt.pop %v1134
    %v1169 = vmul.f32 %v1168, %v1134
    %v1170 = vmul.f32 %v1169, %v1168
    %v1171 = vmul.f32 0.5, %v1170
    %v1172 = vsub.f32 1.5, %v1171
    %v1173 = vmul.f32 %v1168, %v1172
    %vm1174 = vweird.f32 %v1134
    %vm1175 = vweird.f32 %v1168
    %vm1176 = vmor %vm1174, %vm1175
    %v1177 = vsel %vm1176, %v1168, %v1173
    %v1178 = vrsqrt.pop %v1135
    %v1179 = vmul.f32 %v1178, %v1135
    %v1180 = vmul.f32 %v1179, %v1178
    %v1181 = vmul.f32 0.5, %v1180
    %v1182 = vsub.f32 1.5, %v1181
    %v1183 = vmul.f32 %v1178, %v1182
    %vm1184 = vweird.f32 %v1135
    %vm1185 = vweird.f32 %v1178
    %vm1186 = vmor %vm1184, %vm1185
    %v1187 = vsel %vm1186, %v1178, %v1183
    %v1188 = vrsqrt.pop %v1136
    %v1189 = vmul.f32 %v1188, %v1136
    %v1190 = vmul.f32 %v1189, %v1188
    %v1191 = vmul.f32 0.5, %v1190
    %v1192 = vsub.f32 1.5, %v1191
    %v1193 = vmul.f32 %v1188, %v1192
    %vm1194 = vweird.f32 %v1136
    %vm1195 = vweird.f32 %v1188
    %vm1196 = vmor %vm1194, %vm1195
    %v1197 = vsel %vm1196, %v1188, %v1193
    %v1198 = vrsqrt.pop %v1137
    %v1199 = vmul.f32 %v1198, %v1137
    %v1200 = vmul.f32 %v1199, %v1198
    %v1201 = vmul.f32 0.5, %v1200
    %v1202 = vsub.f32 1.5, %v1201
    %v1203 = vmul.f32 %v1198, %v1202
    %vm1204 = vweird.f32 %v1137
    %vm1205 = vweird.f32 %v1198
    %vm1206 = vmor %vm1204, %vm1205
    %v1207 = vsel %vm1206, %v1198, %v1203
    %v1208 = vrsqrt.pop %v1138
    %v1209 = vmul.f32 %v1208, %v1138
    %v1210 = vmul.f32 %v1209, %v1208
    %v1211 = vmul.f32 0.5, %v1210
    %v1212 = vsub.f32 1.5, %v1211
    %v1213 = vmul.f32 %v1208, %v1212
    %vm1214 = vweird.f32 %v1138
    %vm1215 = vweird.f32 %v1208
    %vm1216 = vmor %vm1214, %vm1215
    %v1217 = vsel %vm1216, %v1208, %v1213
    %v1218 = vrsqrt.pop %v1139
    %v1219 = vmul.f32 %v1218, %v1139
    %v1220 = vmul.f32 %v1219, %v1218
    %v1221 = vmul.f32 0.5, %v1220
    %v1222 = vsub.f32 1.5, %v1221
    %v1223 = vmul.f32 %v1218, %v1222
    %vm1224 = vweird.f32 %v1139
    %vm1225 = vweird.f32 %v1218
    %vm1226 = vmor %vm1224, %vm1225
    %v1227 = vsel %vm1226, %v1218, %v1223
    %v1228 = vrsqrt.pop %v1140
    %v1229 = vmul.f32 %v1228, %v1140
    %v1230 = vmul.f32 %v1229, %v1228
    %v1231 = vmul.f32 0.5, %v1230
    %v1232 = vsub.f32 1.5, %v1231
    %v1233 = vmul.f32 %v1228, %v1232
    %vm1234 = vweird.f32 %v1140
    %vm1235 = vweird.f32 %v1228
    %vm1236 = vmor %vm1234, %vm1235
    %v1237 = vsel %vm1236, %v1228, %v1233
    %v1238 = vrsqrt.pop %v1141
    %v1239 = vmul.f32 %v1238, %v1141
    %v1240 = vmul.f32 %v1239, %v1238
    %v1241 = vmul.f32 0.5, %v1240
    %v1242 = vsub.f32 1.5, %v1241
    %v1243 = vmul.f32 %v1238, %v1242
    %vm1244 = vweird.f32 %v1141
    %vm1245 = vweird.f32 %v1238
    %vm1246 = vmor %vm1244, %vm1245
    %v1247 = vsel %vm1246, %v1238, %v1243
    %v1248 = vrsqrt.pop %v1142
    %v1249 = vmul.f32 %v1248, %v1142
    %v1250 = vmul.f32 %v1249, %v1248
    %v1251 = vmul.f32 0.5, %v1250
    %v1252 = vsub.f32 1.5, %v1251
    %v1253 = vmul.f32 %v1248, %v1252
    %vm1254 = vweird.f32 %v1142
    %vm1255 = vweird.f32 %v1248
    %vm1256 = vmor %vm1254, %vm1255
    %v1257 = vsel %vm1256, %v1248, %v1253
    %v1258 = vrsqrt.pop %v1143
    %v1259 = vmul.f32 %v1258, %v1143
    %v1260 = vmul.f32 %v1259, %v1258
    %v1261 = vmul.f32 0.5, %v1260
    %v1262 = vsub.f32 1.5, %v1261
    %v1263 = vmul.f32 %v1258, %v1262
    %vm1264 = vweird.f32 %v1143
    %vm1265 = vweird.f32 %v1258
    %vm1266 = vmor %vm1264, %vm1265
    %v1267 = vsel %vm1266, %v1258, %v1263
    %v1268 = vrsqrt.pop %v1144
    %v1269 = vmul.f32 %v1268, %v1144
    %v1270 = vmul.f32 %v1269, %v1268
    %v1271 = vmul.f32 0.5, %v1270
    %v1272 = vsub.f32 1.5, %v1271
    %v1273 = vmul.f32 %v1268, %v1272
    %vm1274 = vweird.f32 %v1144
    %vm1275 = vweird.f32 %v1268
    %vm1276 = vmor %vm1274, %vm1275
    %v1277 = vsel %vm1276, %v1268, %v1273
    %v1278 = vrsqrt.pop %v1145
    %v1279 = vmul.f32 %v1278, %v1145
    %v1280 = vmul.f32 %v1279, %v1278
    %v1281 = vmul.f32 0.5, %v1280
    %v1282 = vsub.f32 1.5, %v1281
    %v1283 = vmul.f32 %v1278, %v1282
    %vm1284 = vweird.f32 %v1145
    %vm1285 = vweird.f32 %v1278
    %vm1286 = vmor %vm1284, %vm1285
    %v1287 = vsel %vm1286, %v1278, %v1283
    %v1288 = vrsqrt.pop %v1146
    %v1289 = vmul.f32 %v1288, %v1146
    %v1290 = vmul.f32 %v1289, %v1288
    %v1291 = vmul.f32 0.5, %v1290
    %v1292 = vsub.f32 1.5, %v1291
    %v1293 = vmul.f32 %v1288, %v1292
    %vm1294 = vweird.f32 %v1146
    %vm1295 = vweird.f32 %v1288
    %vm1296 = vmor %vm1294, %vm1295
    %v1297 = vsel %vm1296, %v1288, %v1293
    %v1298 = vrsqrt.pop %v1147
    %v1299 = vmul.f32 %v1298, %v1147
    %v1300 = vmul.f32 %v1299, %v1298
    %v1301 = vmul.f32 0.5, %v1300
    %v1302 = vsub.f32 1.5, %v1301
    %v1303 = vmul.f32 %v1298, %v1302
    %vm1304 = vweird.f32 %v1147
    %vm1305 = vweird.f32 %v1298
    %vm1306 = vmor %vm1304, %vm1305
    %v1307 = vsel %vm1306, %v1298, %v1303
    %v1308 = vmul.f32 %v1036, %v1157
    %v1309 = vmul.f32 %v1037, %v1167
    %v1310 = vmul.f32 %v1038, %v1177
    %v1311 = vmul.f32 %v1039, %v1187
    %v1312 = vmul.f32 %v1040, %v1197
    %v1313 = vmul.f32 %v1041, %v1207
    %v1314 = vmul.f32 %v1042, %v1217
    %v1315 = vmul.f32 %v1043, %v1227
    %v1316 = vmul.f32 %v1044, %v1237
    %v1317 = vmul.f32 %v1045, %v1247
    %v1318 = vmul.f32 %v1046, %v1257
    %v1319 = vmul.f32 %v1047, %v1267
    %v1320 = vmul.f32 %v1048, %v1277
    %v1321 = vmul.f32 %v1049, %v1287
    %v1322 = vmul.f32 %v1050, %v1297
    %v1323 = vmul.f32 %v1051, %v1307
    %v1325 = vperm.slane %v113, 0
    %v1327 = vmul.f32 %v1308, %v1325
    %v1328 = vmul.f32 %v1309, %v1325
    %v1329 = vmul.f32 %v1310, %v1325
    %v1330 = vmul.f32 %v1311, %v1325
    %v1331 = vmul.f32 %v1312, %v1325
    %v1332 = vmul.f32 %v1313, %v1325
    %v1333 = vmul.f32 %v1314, %v1325
    %v1334 = vmul.f32 %v1315, %v1325
    %v1335 = vmul.f32 %v1316, %v1325
    %v1336 = vmul.f32 %v1317, %v1325
    %v1337 = vmul.f32 %v1318, %v1325
    %v1338 = vmul.f32 %v1319, %v1325
    %v1339 = vmul.f32 %v1320, %v1325
    %v1340 = vmul.f32 %v1321, %v1325
    %v1341 = vmul.f32 %v1322, %v1325
    %v1342 = vmul.f32 %v1323, %v1325
    %v1344 = vperm.slane %v114, 0
    %v1346 = vadd.f32 %v1327, %v1344
    %v1347 = vadd.f32 %v1328, %v1344
    %v1348 = vadd.f32 %v1329, %v1344
    %v1349 = vadd.f32 %v1330, %v1344
    %v1350 = vadd.f32 %v1331, %v1344
    %v1351 = vadd.f32 %v1332, %v1344
    %v1352 = vadd.f32 %v1333, %v1344
    %v1353 = vadd.f32 %v1334, %v1344
    %v1354 = vadd.f32 %v1335, %v1344
    %v1355 = vadd.f32 %v1336, %v1344
    %v1356 = vadd.f32 %v1337, %v1344
    %v1357 = vadd.f32 %v1338, %v1344
    %v1358 = vadd.f32 %v1339, %v1344
    %v1359 = vadd.f32 %v1340, %v1344
    %v1360 = vadd.f32 %v1341, %v1344
    %v1361 = vadd.f32 %v1342, %v1344
    %v1362 = vld [vmem:[#allocation7] sm:$0xf]
    %v1363 = vld [vmem:[#allocation7 + $0x4] sm:$0xf]
    %v1364 = vld [vmem:[#allocation7 + $0x8] sm:$0xf]
    %v1365 = vld [vmem:[#allocation7 + $0xc] sm:$0xf]
    %v1366 = vld [vmem:[#allocation7 + $0x10] sm:$0xf]
    %v1367 = vld [vmem:[#allocation7 + $0x14] sm:$0xf]
    %v1368 = vld [vmem:[#allocation7 + $0x18] sm:$0xf]
    %v1369 = vld [vmem:[#allocation7 + $0x1c] sm:$0xf]
    %v1370 = vld [vmem:[#allocation7 + $0x20] sm:$0xf]
    %v1371 = vld [vmem:[#allocation7 + $0x24] sm:$0xf]
    %v1372 = vld [vmem:[#allocation7 + $0x28] sm:$0xf]
    %v1373 = vld [vmem:[#allocation7 + $0x2c] sm:$0xf]
    %v1374 = vld [vmem:[#allocation7 + $0x30] sm:$0xf]
    %v1375 = vld [vmem:[#allocation7 + $0x34] sm:$0xf]
    %v1376 = vld [vmem:[#allocation7 + $0x38] sm:$0xf]
    %v1377 = vld [vmem:[#allocation7 + $0x3c] sm:$0xf]
    %v1378 = vld [vmem:[%s6] sm:$0x1]
    %v1379 = vld [vmem:[%s7] sm:$0x1]
    %v1380 = vld [vmem:[%s8] sm:$0x1]
    %v1381 = vpack.c.bf16 %v1347, %v1346
    %v1382 = vpack.c.bf16 %v1349, %v1348
    %v1383 = vpack.c.bf16 %v1351, %v1350
    %v1384 = vpack.c.bf16 %v1353, %v1352
    %v1385 = vpack.c.bf16 %v1355, %v1354
    %v1386 = vpack.c.bf16 %v1357, %v1356
    %v1387 = vpack.c.bf16 %v1359, %v1358
    %v1388 = vpack.c.bf16 %v1361, %v1360
    %v1390 = vperm.slane %v1378, 0
    %v1408 = vunpack.c.l.b16 %v1362
    %v1409 = vunpack.c.l.b16 %v1363
    %v1410 = vunpack.c.l.b16 %v1364
    %v1411 = vunpack.c.l.b16 %v1365
    %v1412 = vunpack.c.l.b16 %v1366
    %v1413 = vunpack.c.l.b16 %v1367
    %v1414 = vunpack.c.l.b16 %v1368
    %v1415 = vunpack.c.l.b16 %v1369
    %v1416 = vunpack.c.l.b16 %v1370
    %v1417 = vunpack.c.l.b16 %v1371
    %v1418 = vunpack.c.l.b16 %v1372
    %v1419 = vunpack.c.l.b16 %v1373
    %v1420 = vunpack.c.l.b16 %v1374
    %v1421 = vunpack.c.l.b16 %v1375
    %v1422 = vunpack.c.l.b16 %v1376
    %v1423 = vunpack.c.l.b16 %v1377
    %v1424 = vpack.c.b16 %v1409, %v1408
    %v1425 = vpack.c.b16 %v1411, %v1410
    %v1426 = vpack.c.b16 %v1413, %v1412
    %v1427 = vpack.c.b16 %v1415, %v1414
    %v1428 = vpack.c.b16 %v1417, %v1416
    %v1429 = vpack.c.b16 %v1419, %v1418
    %v1430 = vpack.c.b16 %v1421, %v1420
    %v1431 = vpack.c.b16 %v1423, %v1422
    %1440 = vmatpush.bf16.msra.mxu0 %v1431
    %1441 = vmatpush.bf16.msra.mxu0 %v1430
    %1442 = vmatpush.bf16.msra.mxu0 %v1429
    %1443 = vmatpush.bf16.msra.mxu0 %v1428
    %1444 = vmatpush.bf16.msra.mxu0 %v1427
    %1445 = vmatpush.bf16.msra.mxu0 %v1426
    %1446 = vmatpush.bf16.msra.mxu0 %v1425
    %1447 = vmatpush.bf16.msra.mxu0 %v1424
    %1448 = vmatmul.bf16.gmra.mxu0 %v1381
    %v1449 = vpop.f32.mrf.mxu0
    %v1450 = vadd.f32 %v1390, %v1449
    %v1451 = vpop.f32.mrf.mxu0
    %v1452 = vadd.f32 %v1390, %v1451
    %1453 = vmatmul.bf16.gmra.mxu0 %v1382
    %v1454 = vpop.f32.mrf.mxu0
    %v1455 = vadd.f32 %v1390, %v1454
    %v1456 = vpop.f32.mrf.mxu0
    %v1457 = vadd.f32 %v1390, %v1456
    %1458 = vmatmul.bf16.gmra.mxu0 %v1383
    %v1459 = vpop.f32.mrf.mxu0
    %v1460 = vadd.f32 %v1390, %v1459
    %v1461 = vpop.f32.mrf.mxu0
    %v1462 = vadd.f32 %v1390, %v1461
    %1463 = vmatmul.bf16.gmra.mxu0 %v1384
    %v1464 = vpop.f32.mrf.mxu0
    %v1465 = vadd.f32 %v1390, %v1464
    %v1466 = vpop.f32.mrf.mxu0
    %v1467 = vadd.f32 %v1390, %v1466
    %1468 = vmatmul.bf16.gmra.mxu0 %v1385
    %v1469 = vpop.f32.mrf.mxu0
    %v1470 = vadd.f32 %v1390, %v1469
    %v1471 = vpop.f32.mrf.mxu0
    %v1472 = vadd.f32 %v1390, %v1471
    %1473 = vmatmul.bf16.gmra.mxu0 %v1386
    %v1474 = vpop.f32.mrf.mxu0
    %v1475 = vadd.f32 %v1390, %v1474
    %v1476 = vpop.f32.mrf.mxu0
    %v1477 = vadd.f32 %v1390, %v1476
    %1478 = vmatmul.bf16.gmra.mxu0 %v1387
    %v1479 = vpop.f32.mrf.mxu0
    %v1480 = vadd.f32 %v1390, %v1479
    %v1481 = vpop.f32.mrf.mxu0
    %v1482 = vadd.f32 %v1390, %v1481
    %1483 = vmatmul.bf16.gmra.mxu0 %v1388
    %v1484 = vpop.f32.mrf.mxu0
    %v1485 = vadd.f32 %v1390, %v1484
    %v1486 = vpop.f32.mrf.mxu0
    %v1487 = vadd.f32 %v1390, %v1486
    %1488 = vdwg.mxu0
    %v1489 = vmul.f32 %v1450, 0.5
    %v1490 = vmul.f32 %v1452, 0.5
    %v1491 = vmul.f32 %v1455, 0.5
    %v1492 = vmul.f32 %v1457, 0.5
    %v1493 = vmul.f32 %v1460, 0.5
    %v1494 = vmul.f32 %v1462, 0.5
    %v1495 = vmul.f32 %v1465, 0.5
    %v1496 = vmul.f32 %v1467, 0.5
    %v1497 = vmul.f32 %v1470, 0.5
    %v1498 = vmul.f32 %v1472, 0.5
    %v1499 = vmul.f32 %v1475, 0.5
    %v1500 = vmul.f32 %v1477, 0.5
    %v1501 = vmul.f32 %v1480, 0.5
    %v1502 = vmul.f32 %v1482, 0.5
    %v1503 = vmul.f32 %v1485, 0.5
    %v1504 = vmul.f32 %v1487, 0.5
    %v1505 = vmul.f32 %v1450, 0.70710677
    %v1506 = vmul.f32 %v1452, 0.70710677
    %v1507 = vmul.f32 %v1455, 0.70710677
    %v1508 = vmul.f32 %v1457, 0.70710677
    %v1509 = vmul.f32 %v1460, 0.70710677
    %v1510 = vmul.f32 %v1462, 0.70710677
    %v1511 = vmul.f32 %v1465, 0.70710677
    %v1512 = vmul.f32 %v1467, 0.70710677
    %v1513 = vmul.f32 %v1470, 0.70710677
    %v1514 = vmul.f32 %v1472, 0.70710677
    %v1515 = vmul.f32 %v1475, 0.70710677
    %v1516 = vmul.f32 %v1477, 0.70710677
    %v1517 = vmul.f32 %v1480, 0.70710677
    %v1518 = vmul.f32 %v1482, 0.70710677
    %v1519 = vmul.f32 %v1485, 0.70710677
    %v1520 = vmul.f32 %v1487, 0.70710677
    %v1521 = vmul.f32 %v1505, %v1505
    %v1522 = vmin.f32 16.0, %v1521
    %v1523 = vmul.f32 %v1522, 2.1237322e-06
    %v1524 = vadd.f32 %v1523, 0.00028619796
    %v1525 = vmul.f32 %v1522, %v1524
    %v1526 = vadd.f32 %v1525, 0.0036580483
    %v1527 = vmul.f32 %v1522, %v1526
    %v1528 = vadd.f32 %v1527, 0.05243302
    %v1529 = vmul.f32 %v1522, %v1528
    %v1530 = vadd.f32 %v1529, 0.18741608
    %v1531 = vmul.f32 %v1522, %v1530
    %v1532 = vadd.f32 %v1531, 1.1283791
    %v1533 = vmul.f32 %v1505, %v1532
    %v1534 = vmul.f32 %v1522, 3.8918573e-05
    %v1535 = vadd.f32 %v1534, 0.001143296
    %v1536 = vmul.f32 %v1522, %v1535
    %v1537 = vadd.f32 %v1536, 0.014752088
    %v1538 = vmul.f32 %v1522, %v1537
    %v1539 = vadd.f32 %v1538, 0.112945676
    %v1540 = vmul.f32 %v1522, %v1539
    %v1541 = vadd.f32 %v1540, 0.4994258
    %v1542 = vmul.f32 %v1522, %v1541
    %v1543 = vadd.f32 %v1542, 1.0
    %v1544 = vrcp.pop %v1543
    %v1545 = vmul.f32 %v1543, %v1544
    %v1546 = vsub.f32 1.0, %v1545
    %v1547 = vmul.f32 %v1544, %v1546
    %v1548 = vadd.f32 %v1544, %v1547
    %vm1549 = vweird.f32 %v1543
    %vm1550 = vweird.f32 %v1544
    %vm1551 = vmor %vm1549, %vm1550
    %v1552 = vsel %vm1551, %v1544, %v1548
    %v1553 = vand.u32 2147483647, %v1543
    %vm1554 = vcmp.eq.f32.partialorder %v1553, 8.507059e+37
    %v1555 = vand.u32 %v1543, 2147483648
    %v1556 = vor.u32 1.1754944e-38, %v1555
    %v1557 = vsel %vm1554, %v1556, %v1552
    %v1558 = vmul.f32 %v1533, %v1557
    %v1559 = vmin.f32 %v1558, 1.0
    %v1560 = vmax.f32 %v1559, -1.0
    %v1561 = vmul.f32 %v1506, %v1506
    %v1562 = vmin.f32 16.0, %v1561
    %v1563 = vmul.f32 %v1562, 2.1237322e-06
    %v1564 = vadd.f32 %v1563, 0.00028619796
    %v1565 = vmul.f32 %v1562, %v1564
    %v1566 = vadd.f32 %v1565, 0.0036580483
    %v1567 = vmul.f32 %v1562, %v1566
    %v1568 = vadd.f32 %v1567, 0.05243302
    %v1569 = vmul.f32 %v1562, %v1568
    %v1570 = vadd.f32 %v1569, 0.18741608
    %v1571 = vmul.f32 %v1562, %v1570
    %v1572 = vadd.f32 %v1571, 1.1283791
    %v1573 = vmul.f32 %v1506, %v1572
    %v1574 = vmul.f32 %v1562, 3.8918573e-05
    %v1575 = vadd.f32 %v1574, 0.001143296
    %v1576 = vmul.f32 %v1562, %v1575
    %v1577 = vadd.f32 %v1576, 0.014752088
    %v1578 = vmul.f32 %v1562, %v1577
    %v1579 = vadd.f32 %v1578, 0.112945676
    %v1580 = vmul.f32 %v1562, %v1579
    %v1581 = vadd.f32 %v1580, 0.4994258
    %v1582 = vmul.f32 %v1562, %v1581
    %v1583 = vadd.f32 %v1582, 1.0
    %v1584 = vrcp.pop %v1583
    %v1585 = vmul.f32 %v1583, %v1584
    %v1586 = vsub.f32 1.0, %v1585
    %v1587 = vmul.f32 %v1584, %v1586
    %v1588 = vadd.f32 %v1584, %v1587
    %vm1589 = vweird.f32 %v1583
    %vm1590 = vweird.f32 %v1584
    %vm1591 = vmor %vm1589, %vm1590
    %v1592 = vsel %vm1591, %v1584, %v1588
    %v1593 = vand.u32 2147483647, %v1583
    %vm1594 = vcmp.eq.f32.partialorder %v1593, 8.507059e+37
    %v1595 = vand.u32 %v1583, 2147483648
    %v1596 = vor.u32 1.1754944e-38, %v1595
    %v1597 = vsel %vm1594, %v1596, %v1592
    %v1598 = vmul.f32 %v1573, %v1597
    %v1599 = vmin.f32 %v1598, 1.0
    %v1600 = vmax.f32 %v1599, -1.0
    %v1601 = vmul.f32 %v1507, %v1507
    %v1602 = vmin.f32 16.0, %v1601
    %v1603 = vmul.f32 %v1602, 2.1237322e-06
    %v1604 = vadd.f32 %v1603, 0.00028619796
    %v1605 = vmul.f32 %v1602, %v1604
    %v1606 = vadd.f32 %v1605, 0.0036580483
    %v1607 = vmul.f32 %v1602, %v1606
    %v1608 = vadd.f32 %v1607, 0.05243302
    %v1609 = vmul.f32 %v1602, %v1608
    %v1610 = vadd.f32 %v1609, 0.18741608
    %v1611 = vmul.f32 %v1602, %v1610
    %v1612 = vadd.f32 %v1611, 1.1283791
    %v1613 = vmul.f32 %v1507, %v1612
    %v1614 = vmul.f32 %v1602, 3.8918573e-05
    %v1615 = vadd.f32 %v1614, 0.001143296
    %v1616 = vmul.f32 %v1602, %v1615
    %v1617 = vadd.f32 %v1616, 0.014752088
    %v1618 = vmul.f32 %v1602, %v1617
    %v1619 = vadd.f32 %v1618, 0.112945676
    %v1620 = vmul.f32 %v1602, %v1619
    %v1621 = vadd.f32 %v1620, 0.4994258
    %v1622 = vmul.f32 %v1602, %v1621
    %v1623 = vadd.f32 %v1622, 1.0
    %v1624 = vrcp.pop %v1623
    %v1625 = vmul.f32 %v1623, %v1624
    %v1626 = vsub.f32 1.0, %v1625
    %v1627 = vmul.f32 %v1624, %v1626
    %v1628 = vadd.f32 %v1624, %v1627
    %vm1629 = vweird.f32 %v1623
    %vm1630 = vweird.f32 %v1624
    %vm1631 = vmor %vm1629, %vm1630
    %v1632 = vsel %vm1631, %v1624, %v1628
    %v1633 = vand.u32 2147483647, %v1623
    %vm1634 = vcmp.eq.f32.partialorder %v1633, 8.507059e+37
    %v1635 = vand.u32 %v1623, 2147483648
    %v1636 = vor.u32 1.1754944e-38, %v1635
    %v1637 = vsel %vm1634, %v1636, %v1632
    %v1638 = vmul.f32 %v1613, %v1637
    %v1639 = vmin.f32 %v1638, 1.0
    %v1640 = vmax.f32 %v1639, -1.0
    %v1641 = vmul.f32 %v1508, %v1508
    %v1642 = vmin.f32 16.0, %v1641
    %v1643 = vmul.f32 %v1642, 2.1237322e-06
    %v1644 = vadd.f32 %v1643, 0.00028619796
    %v1645 = vmul.f32 %v1642, %v1644
    %v1646 = vadd.f32 %v1645, 0.0036580483
    %v1647 = vmul.f32 %v1642, %v1646
    %v1648 = vadd.f32 %v1647, 0.05243302
    %v1649 = vmul.f32 %v1642, %v1648
    %v1650 = vadd.f32 %v1649, 0.18741608
    %v1651 = vmul.f32 %v1642, %v1650
    %v1652 = vadd.f32 %v1651, 1.1283791
    %v1653 = vmul.f32 %v1508, %v1652
    %v1654 = vmul.f32 %v1642, 3.8918573e-05
    %v1655 = vadd.f32 %v1654, 0.001143296
    %v1656 = vmul.f32 %v1642, %v1655
    %v1657 = vadd.f32 %v1656, 0.014752088
    %v1658 = vmul.f32 %v1642, %v1657
    %v1659 = vadd.f32 %v1658, 0.112945676
    %v1660 = vmul.f32 %v1642, %v1659
    %v1661 = vadd.f32 %v1660, 0.4994258
    %v1662 = vmul.f32 %v1642, %v1661
    %v1663 = vadd.f32 %v1662, 1.0
    %v1664 = vrcp.pop %v1663
    %v1665 = vmul.f32 %v1663, %v1664
    %v1666 = vsub.f32 1.0, %v1665
    %v1667 = vmul.f32 %v1664, %v1666
    %v1668 = vadd.f32 %v1664, %v1667
    %vm1669 = vweird.f32 %v1663
    %vm1670 = vweird.f32 %v1664
    %vm1671 = vmor %vm1669, %vm1670
    %v1672 = vsel %vm1671, %v1664, %v1668
    %v1673 = vand.u32 2147483647, %v1663
    %vm1674 = vcmp.eq.f32.partialorder %v1673, 8.507059e+37
    %v1675 = vand.u32 %v1663, 2147483648
    %v1676 = vor.u32 1.1754944e-38, %v1675
    %v1677 = vsel %vm1674, %v1676, %v1672
    %v1678 = vmul.f32 %v1653, %v1677
    %v1679 = vmin.f32 %v1678, 1.0
    %v1680 = vmax.f32 %v1679, -1.0
    %v1681 = vmul.f32 %v1509, %v1509
    %v1682 = vmin.f32 16.0, %v1681
    %v1683 = vmul.f32 %v1682, 2.1237322e-06
    %v1684 = vadd.f32 %v1683, 0.00028619796
    %v1685 = vmul.f32 %v1682, %v1684
    %v1686 = vadd.f32 %v1685, 0.0036580483
    %v1687 = vmul.f32 %v1682, %v1686
    %v1688 = vadd.f32 %v1687, 0.05243302
    %v1689 = vmul.f32 %v1682, %v1688
    %v1690 = vadd.f32 %v1689, 0.18741608
    %v1691 = vmul.f32 %v1682, %v1690
    %v1692 = vadd.f32 %v1691, 1.1283791
    %v1693 = vmul.f32 %v1509, %v1692
    %v1694 = vmul.f32 %v1682, 3.8918573e-05
    %v1695 = vadd.f32 %v1694, 0.001143296
    %v1696 = vmul.f32 %v1682, %v1695
    %v1697 = vadd.f32 %v1696, 0.014752088
    %v1698 = vmul.f32 %v1682, %v1697
    %v1699 = vadd.f32 %v1698, 0.112945676
    %v1700 = vmul.f32 %v1682, %v1699
    %v1701 = vadd.f32 %v1700, 0.4994258
    %v1702 = vmul.f32 %v1682, %v1701
    %v1703 = vadd.f32 %v1702, 1.0
    %v1704 = vrcp.pop %v1703
    %v1705 = vmul.f32 %v1703, %v1704
    %v1706 = vsub.f32 1.0, %v1705
    %v1707 = vmul.f32 %v1704, %v1706
    %v1708 = vadd.f32 %v1704, %v1707
    %vm1709 = vweird.f32 %v1703
    %vm1710 = vweird.f32 %v1704
    %vm1711 = vmor %vm1709, %vm1710
    %v1712 = vsel %vm1711, %v1704, %v1708
    %v1713 = vand.u32 2147483647, %v1703
    %vm1714 = vcmp.eq.f32.partialorder %v1713, 8.507059e+37
    %v1715 = vand.u32 %v1703, 2147483648
    %v1716 = vor.u32 1.1754944e-38, %v1715
    %v1717 = vsel %vm1714, %v1716, %v1712
    %v1718 = vmul.f32 %v1693, %v1717
    %v1719 = vmin.f32 %v1718, 1.0
    %v1720 = vmax.f32 %v1719, -1.0
    %v1721 = vmul.f32 %v1510, %v1510
    %v1722 = vmin.f32 16.0, %v1721
    %v1723 = vmul.f32 %v1722, 2.1237322e-06
    %v1724 = vadd.f32 %v1723, 0.00028619796
    %v1725 = vmul.f32 %v1722, %v1724
    %v1726 = vadd.f32 %v1725, 0.0036580483
    %v1727 = vmul.f32 %v1722, %v1726
    %v1728 = vadd.f32 %v1727, 0.05243302
    %v1729 = vmul.f32 %v1722, %v1728
    %v1730 = vadd.f32 %v1729, 0.18741608
    %v1731 = vmul.f32 %v1722, %v1730
    %v1732 = vadd.f32 %v1731, 1.1283791
    %v1733 = vmul.f32 %v1510, %v1732
    %v1734 = vmul.f32 %v1722, 3.8918573e-05
    %v1735 = vadd.f32 %v1734, 0.001143296
    %v1736 = vmul.f32 %v1722, %v1735
    %v1737 = vadd.f32 %v1736, 0.014752088
    %v1738 = vmul.f32 %v1722, %v1737
    %v1739 = vadd.f32 %v1738, 0.112945676
    %v1740 = vmul.f32 %v1722, %v1739
    %v1741 = vadd.f32 %v1740, 0.4994258
    %v1742 = vmul.f32 %v1722, %v1741
    %v1743 = vadd.f32 %v1742, 1.0
    %v1744 = vrcp.pop %v1743
    %v1745 = vmul.f32 %v1743, %v1744
    %v1746 = vsub.f32 1.0, %v1745
    %v1747 = vmul.f32 %v1744, %v1746
    %v1748 = vadd.f32 %v1744, %v1747
    %vm1749 = vweird.f32 %v1743
    %vm1750 = vweird.f32 %v1744
    %vm1751 = vmor %vm1749, %vm1750
    %v1752 = vsel %vm1751, %v1744, %v1748
    %v1753 = vand.u32 2147483647, %v1743
    %vm1754 = vcmp.eq.f32.partialorder %v1753, 8.507059e+37
    %v1755 = vand.u32 %v1743, 2147483648
    %v1756 = vor.u32 1.1754944e-38, %v1755
    %v1757 = vsel %vm1754, %v1756, %v1752
    %v1758 = vmul.f32 %v1733, %v1757
    %v1759 = vmin.f32 %v1758, 1.0
    %v1760 = vmax.f32 %v1759, -1.0
    %v1761 = vmul.f32 %v1511, %v1511
    %v1762 = vmin.f32 16.0, %v1761
    %v1763 = vmul.f32 %v1762, 2.1237322e-06
    %v1764 = vadd.f32 %v1763, 0.00028619796
    %v1765 = vmul.f32 %v1762, %v1764
    %v1766 = vadd.f32 %v1765, 0.0036580483
    %v1767 = vmul.f32 %v1762, %v1766
    %v1768 = vadd.f32 %v1767, 0.05243302
    %v1769 = vmul.f32 %v1762, %v1768
    %v1770 = vadd.f32 %v1769, 0.18741608
    %v1771 = vmul.f32 %v1762, %v1770
    %v1772 = vadd.f32 %v1771, 1.1283791
    %v1773 = vmul.f32 %v1511, %v1772
    %v1774 = vmul.f32 %v1762, 3.8918573e-05
    %v1775 = vadd.f32 %v1774, 0.001143296
    %v1776 = vmul.f32 %v1762, %v1775
    %v1777 = vadd.f32 %v1776, 0.014752088
    %v1778 = vmul.f32 %v1762, %v1777
    %v1779 = vadd.f32 %v1778, 0.112945676
    %v1780 = vmul.f32 %v1762, %v1779
    %v1781 = vadd.f32 %v1780, 0.4994258
    %v1782 = vmul.f32 %v1762, %v1781
    %v1783 = vadd.f32 %v1782, 1.0
    %v1784 = vrcp.pop %v1783
    %v1785 = vmul.f32 %v1783, %v1784
    %v1786 = vsub.f32 1.0, %v1785
    %v1787 = vmul.f32 %v1784, %v1786
    %v1788 = vadd.f32 %v1784, %v1787
    %vm1789 = vweird.f32 %v1783
    %vm1790 = vweird.f32 %v1784
    %vm1791 = vmor %vm1789, %vm1790
    %v1792 = vsel %vm1791, %v1784, %v1788
    %v1793 = vand.u32 2147483647, %v1783
    %vm1794 = vcmp.eq.f32.partialorder %v1793, 8.507059e+37
    %v1795 = vand.u32 %v1783, 2147483648
    %v1796 = vor.u32 1.1754944e-38, %v1795
    %v1797 = vsel %vm1794, %v1796, %v1792
    %v1798 = vmul.f32 %v1773, %v1797
    %v1799 = vmin.f32 %v1798, 1.0
    %v1800 = vmax.f32 %v1799, -1.0
    %v1801 = vmul.f32 %v1512, %v1512
    %v1802 = vmin.f32 16.0, %v1801
    %v1803 = vmul.f32 %v1802, 2.1237322e-06
    %v1804 = vadd.f32 %v1803, 0.00028619796
    %v1805 = vmul.f32 %v1802, %v1804
    %v1806 = vadd.f32 %v1805, 0.0036580483
    %v1807 = vmul.f32 %v1802, %v1806
    %v1808 = vadd.f32 %v1807, 0.05243302
    %v1809 = vmul.f32 %v1802, %v1808
    %v1810 = vadd.f32 %v1809, 0.18741608
    %v1811 = vmul.f32 %v1802, %v1810
    %v1812 = vadd.f32 %v1811, 1.1283791
    %v1813 = vmul.f32 %v1512, %v1812
    %v1814 = vmul.f32 %v1802, 3.8918573e-05
    %v1815 = vadd.f32 %v1814, 0.001143296
    %v1816 = vmul.f32 %v1802, %v1815
    %v1817 = vadd.f32 %v1816, 0.014752088
    %v1818 = vmul.f32 %v1802, %v1817
    %v1819 = vadd.f32 %v1818, 0.112945676
    %v1820 = vmul.f32 %v1802, %v1819
    %v1821 = vadd.f32 %v1820, 0.4994258
    %v1822 = vmul.f32 %v1802, %v1821
    %v1823 = vadd.f32 %v1822, 1.0
    %v1824 = vrcp.pop %v1823
    %v1825 = vmul.f32 %v1823, %v1824
    %v1826 = vsub.f32 1.0, %v1825
    %v1827 = vmul.f32 %v1824, %v1826
    %v1828 = vadd.f32 %v1824, %v1827
    %vm1829 = vweird.f32 %v1823
    %vm1830 = vweird.f32 %v1824
    %vm1831 = vmor %vm1829, %vm1830
    %v1832 = vsel %vm1831, %v1824, %v1828
    %v1833 = vand.u32 2147483647, %v1823
    %vm1834 = vcmp.eq.f32.partialorder %v1833, 8.507059e+37
    %v1835 = vand.u32 %v1823, 2147483648
    %v1836 = vor.u32 1.1754944e-38, %v1835
    %v1837 = vsel %vm1834, %v1836, %v1832
    %v1838 = vmul.f32 %v1813, %v1837
    %v1839 = vmin.f32 %v1838, 1.0
    %v1840 = vmax.f32 %v1839, -1.0
    %v1841 = vmul.f32 %v1513, %v1513
    %v1842 = vmin.f32 16.0, %v1841
    %v1843 = vmul.f32 %v1842, 2.1237322e-06
    %v1844 = vadd.f32 %v1843, 0.00028619796
    %v1845 = vmul.f32 %v1842, %v1844
    %v1846 = vadd.f32 %v1845, 0.0036580483
    %v1847 = vmul.f32 %v1842, %v1846
    %v1848 = vadd.f32 %v1847, 0.05243302
    %v1849 = vmul.f32 %v1842, %v1848
    %v1850 = vadd.f32 %v1849, 0.18741608
    %v1851 = vmul.f32 %v1842, %v1850
    %v1852 = vadd.f32 %v1851, 1.1283791
    %v1853 = vmul.f32 %v1513, %v1852
    %v1854 = vmul.f32 %v1842, 3.8918573e-05
    %v1855 = vadd.f32 %v1854, 0.001143296
    %v1856 = vmul.f32 %v1842, %v1855
    %v1857 = vadd.f32 %v1856, 0.014752088
    %v1858 = vmul.f32 %v1842, %v1857
    %v1859 = vadd.f32 %v1858, 0.112945676
    %v1860 = vmul.f32 %v1842, %v1859
    %v1861 = vadd.f32 %v1860, 0.4994258
    %v1862 = vmul.f32 %v1842, %v1861
    %v1863 = vadd.f32 %v1862, 1.0
    %v1864 = vrcp.pop %v1863
    %v1865 = vmul.f32 %v1863, %v1864
    %v1866 = vsub.f32 1.0, %v1865
    %v1867 = vmul.f32 %v1864, %v1866
    %v1868 = vadd.f32 %v1864, %v1867
    %vm1869 = vweird.f32 %v1863
    %vm1870 = vweird.f32 %v1864
    %vm1871 = vmor %vm1869, %vm1870
    %v1872 = vsel %vm1871, %v1864, %v1868
    %v1873 = vand.u32 2147483647, %v1863
    %vm1874 = vcmp.eq.f32.partialorder %v1873, 8.507059e+37
    %v1875 = vand.u32 %v1863, 2147483648
    %v1876 = vor.u32 1.1754944e-38, %v1875
    %v1877 = vsel %vm1874, %v1876, %v1872
    %v1878 = vmul.f32 %v1853, %v1877
    %v1879 = vmin.f32 %v1878, 1.0
    %v1880 = vmax.f32 %v1879, -1.0
    %v1881 = vmul.f32 %v1514, %v1514
    %v1882 = vmin.f32 16.0, %v1881
    %v1883 = vmul.f32 %v1882, 2.1237322e-06
    %v1884 = vadd.f32 %v1883, 0.00028619796
    %v1885 = vmul.f32 %v1882, %v1884
    %v1886 = vadd.f32 %v1885, 0.0036580483
    %v1887 = vmul.f32 %v1882, %v1886
    %v1888 = vadd.f32 %v1887, 0.05243302
    %v1889 = vmul.f32 %v1882, %v1888
    %v1890 = vadd.f32 %v1889, 0.18741608
    %v1891 = vmul.f32 %v1882, %v1890
    %v1892 = vadd.f32 %v1891, 1.1283791
    %v1893 = vmul.f32 %v1514, %v1892
    %v1894 = vmul.f32 %v1882, 3.8918573e-05
    %v1895 = vadd.f32 %v1894, 0.001143296
    %v1896 = vmul.f32 %v1882, %v1895
    %v1897 = vadd.f32 %v1896, 0.014752088
    %v1898 = vmul.f32 %v1882, %v1897
    %v1899 = vadd.f32 %v1898, 0.112945676
    %v1900 = vmul.f32 %v1882, %v1899
    %v1901 = vadd.f32 %v1900, 0.4994258
    %v1902 = vmul.f32 %v1882, %v1901
    %v1903 = vadd.f32 %v1902, 1.0
    %v1904 = vrcp.pop %v1903
    %v1905 = vmul.f32 %v1903, %v1904
    %v1906 = vsub.f32 1.0, %v1905
    %v1907 = vmul.f32 %v1904, %v1906
    %v1908 = vadd.f32 %v1904, %v1907
    %vm1909 = vweird.f32 %v1903
    %vm1910 = vweird.f32 %v1904
    %vm1911 = vmor %vm1909, %vm1910
    %v1912 = vsel %vm1911, %v1904, %v1908
    %v1913 = vand.u32 2147483647, %v1903
    %vm1914 = vcmp.eq.f32.partialorder %v1913, 8.507059e+37
    %v1915 = vand.u32 %v1903, 2147483648
    %v1916 = vor.u32 1.1754944e-38, %v1915
    %v1917 = vsel %vm1914, %v1916, %v1912
    %v1918 = vmul.f32 %v1893, %v1917
    %v1919 = vmin.f32 %v1918, 1.0
    %v1920 = vmax.f32 %v1919, -1.0
    %v1921 = vmul.f32 %v1515, %v1515
    %v1922 = vmin.f32 16.0, %v1921
    %v1923 = vmul.f32 %v1922, 2.1237322e-06
    %v1924 = vadd.f32 %v1923, 0.00028619796
    %v1925 = vmul.f32 %v1922, %v1924
    %v1926 = vadd.f32 %v1925, 0.0036580483
    %v1927 = vmul.f32 %v1922, %v1926
    %v1928 = vadd.f32 %v1927, 0.05243302
    %v1929 = vmul.f32 %v1922, %v1928
    %v1930 = vadd.f32 %v1929, 0.18741608
    %v1931 = vmul.f32 %v1922, %v1930
    %v1932 = vadd.f32 %v1931, 1.1283791
    %v1933 = vmul.f32 %v1515, %v1932
    %v1934 = vmul.f32 %v1922, 3.8918573e-05
    %v1935 = vadd.f32 %v1934, 0.001143296
    %v1936 = vmul.f32 %v1922, %v1935
    %v1937 = vadd.f32 %v1936, 0.014752088
    %v1938 = vmul.f32 %v1922, %v1937
    %v1939 = vadd.f32 %v1938, 0.112945676
    %v1940 = vmul.f32 %v1922, %v1939
    %v1941 = vadd.f32 %v1940, 0.4994258
    %v1942 = vmul.f32 %v1922, %v1941
    %v1943 = vadd.f32 %v1942, 1.0
    %v1944 = vrcp.pop %v1943
    %v1945 = vmul.f32 %v1943, %v1944
    %v1946 = vsub.f32 1.0, %v1945
    %v1947 = vmul.f32 %v1944, %v1946
    %v1948 = vadd.f32 %v1944, %v1947
    %vm1949 = vweird.f32 %v1943
    %vm1950 = vweird.f32 %v1944
    %vm1951 = vmor %vm1949, %vm1950
    %v1952 = vsel %vm1951, %v1944, %v1948
    %v1953 = vand.u32 2147483647, %v1943
    %vm1954 = vcmp.eq.f32.partialorder %v1953, 8.507059e+37
    %v1955 = vand.u32 %v1943, 2147483648
    %v1956 = vor.u32 1.1754944e-38, %v1955
    %v1957 = vsel %vm1954, %v1956, %v1952
    %v1958 = vmul.f32 %v1933, %v1957
    %v1959 = vmin.f32 %v1958, 1.0
    %v1960 = vmax.f32 %v1959, -1.0
    %v1961 = vmul.f32 %v1516, %v1516
    %v1962 = vmin.f32 16.0, %v1961
    %v1963 = vmul.f32 %v1962, 2.1237322e-06
    %v1964 = vadd.f32 %v1963, 0.00028619796
    %v1965 = vmul.f32 %v1962, %v1964
    %v1966 = vadd.f32 %v1965, 0.0036580483
    %v1967 = vmul.f32 %v1962, %v1966
    %v1968 = vadd.f32 %v1967, 0.05243302
    %v1969 = vmul.f32 %v1962, %v1968
    %v1970 = vadd.f32 %v1969, 0.18741608
    %v1971 = vmul.f32 %v1962, %v1970
    %v1972 = vadd.f32 %v1971, 1.1283791
    %v1973 = vmul.f32 %v1516, %v1972
    %v1974 = vmul.f32 %v1962, 3.8918573e-05
    %v1975 = vadd.f32 %v1974, 0.001143296
    %v1976 = vmul.f32 %v1962, %v1975
    %v1977 = vadd.f32 %v1976, 0.014752088
    %v1978 = vmul.f32 %v1962, %v1977
    %v1979 = vadd.f32 %v1978, 0.112945676
    %v1980 = vmul.f32 %v1962, %v1979
    %v1981 = vadd.f32 %v1980, 0.4994258
    %v1982 = vmul.f32 %v1962, %v1981
    %v1983 = vadd.f32 %v1982, 1.0
    %v1984 = vrcp.pop %v1983
    %v1985 = vmul.f32 %v1983, %v1984
    %v1986 = vsub.f32 1.0, %v1985
    %v1987 = vmul.f32 %v1984, %v1986
    %v1988 = vadd.f32 %v1984, %v1987
    %vm1989 = vweird.f32 %v1983
    %vm1990 = vweird.f32 %v1984
    %vm1991 = vmor %vm1989, %vm1990
    %v1992 = vsel %vm1991, %v1984, %v1988
    %v1993 = vand.u32 2147483647, %v1983
    %vm1994 = vcmp.eq.f32.partialorder %v1993, 8.507059e+37
    %v1995 = vand.u32 %v1983, 2147483648
    %v1996 = vor.u32 1.1754944e-38, %v1995
    %v1997 = vsel %vm1994, %v1996, %v1992
    %v1998 = vmul.f32 %v1973, %v1997
    %v1999 = vmin.f32 %v1998, 1.0
    %v2000 = vmax.f32 %v1999, -1.0
    %v2001 = vmul.f32 %v1517, %v1517
    %v2002 = vmin.f32 16.0, %v2001
    %v2003 = vmul.f32 %v2002, 2.1237322e-06
    %v2004 = vadd.f32 %v2003, 0.00028619796
    %v2005 = vmul.f32 %v2002, %v2004
    %v2006 = vadd.f32 %v2005, 0.0036580483
    %v2007 = vmul.f32 %v2002, %v2006
    %v2008 = vadd.f32 %v2007, 0.05243302
    %v2009 = vmul.f32 %v2002, %v2008
    %v2010 = vadd.f32 %v2009, 0.18741608
    %v2011 = vmul.f32 %v2002, %v2010
    %v2012 = vadd.f32 %v2011, 1.1283791
    %v2013 = vmul.f32 %v1517, %v2012
    %v2014 = vmul.f32 %v2002, 3.8918573e-05
    %v2015 = vadd.f32 %v2014, 0.001143296
    %v2016 = vmul.f32 %v2002, %v2015
    %v2017 = vadd.f32 %v2016, 0.014752088
    %v2018 = vmul.f32 %v2002, %v2017
    %v2019 = vadd.f32 %v2018, 0.112945676
    %v2020 = vmul.f32 %v2002, %v2019
    %v2021 = vadd.f32 %v2020, 0.4994258
    %v2022 = vmul.f32 %v2002, %v2021
    %v2023 = vadd.f32 %v2022, 1.0
    %v2024 = vrcp.pop %v2023
    %v2025 = vmul.f32 %v2023, %v2024
    %v2026 = vsub.f32 1.0, %v2025
    %v2027 = vmul.f32 %v2024, %v2026
    %v2028 = vadd.f32 %v2024, %v2027
    %vm2029 = vweird.f32 %v2023
    %vm2030 = vweird.f32 %v2024
    %vm2031 = vmor %vm2029, %vm2030
    %v2032 = vsel %vm2031, %v2024, %v2028
    %v2033 = vand.u32 2147483647, %v2023
    %vm2034 = vcmp.eq.f32.partialorder %v2033, 8.507059e+37
    %v2035 = vand.u32 %v2023, 2147483648
    %v2036 = vor.u32 1.1754944e-38, %v2035
    %v2037 = vsel %vm2034, %v2036, %v2032
    %v2038 = vmul.f32 %v2013, %v2037
    %v2039 = vmin.f32 %v2038, 1.0
    %v2040 = vmax.f32 %v2039, -1.0
    %v2041 = vmul.f32 %v1518, %v1518
    %v2042 = vmin.f32 16.0, %v2041
    %v2043 = vmul.f32 %v2042, 2.1237322e-06
    %v2044 = vadd.f32 %v2043, 0.00028619796
    %v2045 = vmul.f32 %v2042, %v2044
    %v2046 = vadd.f32 %v2045, 0.0036580483
    %v2047 = vmul.f32 %v2042, %v2046
    %v2048 = vadd.f32 %v2047, 0.05243302
    %v2049 = vmul.f32 %v2042, %v2048
    %v2050 = vadd.f32 %v2049, 0.18741608
    %v2051 = vmul.f32 %v2042, %v2050
    %v2052 = vadd.f32 %v2051, 1.1283791
    %v2053 = vmul.f32 %v1518, %v2052
    %v2054 = vmul.f32 %v2042, 3.8918573e-05
    %v2055 = vadd.f32 %v2054, 0.001143296
    %v2056 = vmul.f32 %v2042, %v2055
    %v2057 = vadd.f32 %v2056, 0.014752088
    %v2058 = vmul.f32 %v2042, %v2057
    %v2059 = vadd.f32 %v2058, 0.112945676
    %v2060 = vmul.f32 %v2042, %v2059
    %v2061 = vadd.f32 %v2060, 0.4994258
    %v2062 = vmul.f32 %v2042, %v2061
    %v2063 = vadd.f32 %v2062, 1.0
    %v2064 = vrcp.pop %v2063
    %v2065 = vmul.f32 %v2063, %v2064
    %v2066 = vsub.f32 1.0, %v2065
    %v2067 = vmul.f32 %v2064, %v2066
    %v2068 = vadd.f32 %v2064, %v2067
    %vm2069 = vweird.f32 %v2063
    %vm2070 = vweird.f32 %v2064
    %vm2071 = vmor %vm2069, %vm2070
    %v2072 = vsel %vm2071, %v2064, %v2068
    %v2073 = vand.u32 2147483647, %v2063
    %vm2074 = vcmp.eq.f32.partialorder %v2073, 8.507059e+37
    %v2075 = vand.u32 %v2063, 2147483648
    %v2076 = vor.u32 1.1754944e-38, %v2075
    %v2077 = vsel %vm2074, %v2076, %v2072
    %v2078 = vmul.f32 %v2053, %v2077
    %v2079 = vmin.f32 %v2078, 1.0
    %v2080 = vmax.f32 %v2079, -1.0
    %v2081 = vmul.f32 %v1519, %v1519
    %v2082 = vmin.f32 16.0, %v2081
    %v2083 = vmul.f32 %v2082, 2.1237322e-06
    %v2084 = vadd.f32 %v2083, 0.00028619796
    %v2085 = vmul.f32 %v2082, %v2084
    %v2086 = vadd.f32 %v2085, 0.0036580483
    %v2087 = vmul.f32 %v2082, %v2086
    %v2088 = vadd.f32 %v2087, 0.05243302
    %v2089 = vmul.f32 %v2082, %v2088
    %v2090 = vadd.f32 %v2089, 0.18741608
    %v2091 = vmul.f32 %v2082, %v2090
    %v2092 = vadd.f32 %v2091, 1.1283791
    %v2093 = vmul.f32 %v1519, %v2092
    %v2094 = vmul.f32 %v2082, 3.8918573e-05
    %v2095 = vadd.f32 %v2094, 0.001143296
    %v2096 = vmul.f32 %v2082, %v2095
    %v2097 = vadd.f32 %v2096, 0.014752088
    %v2098 = vmul.f32 %v2082, %v2097
    %v2099 = vadd.f32 %v2098, 0.112945676
    %v2100 = vmul.f32 %v2082, %v2099
    %v2101 = vadd.f32 %v2100, 0.4994258
    %v2102 = vmul.f32 %v2082, %v2101
    %v2103 = vadd.f32 %v2102, 1.0
    %v2104 = vrcp.pop %v2103
    %v2105 = vmul.f32 %v2103, %v2104
    %v2106 = vsub.f32 1.0, %v2105
    %v2107 = vmul.f32 %v2104, %v2106
    %v2108 = vadd.f32 %v2104, %v2107
    %vm2109 = vweird.f32 %v2103
    %vm2110 = vweird.f32 %v2104
    %vm2111 = vmor %vm2109, %vm2110
    %v2112 = vsel %vm2111, %v2104, %v2108
    %v2113 = vand.u32 2147483647, %v2103
    %vm2114 = vcmp.eq.f32.partialorder %v2113, 8.507059e+37
    %v2115 = vand.u32 %v2103, 2147483648
    %v2116 = vor.u32 1.1754944e-38, %v2115
    %v2117 = vsel %vm2114, %v2116, %v2112
    %v2118 = vmul.f32 %v2093, %v2117
    %v2119 = vmin.f32 %v2118, 1.0
    %v2120 = vmax.f32 %v2119, -1.0
    %v2121 = vmul.f32 %v1520, %v1520
    %v2122 = vmin.f32 16.0, %v2121
    %v2123 = vmul.f32 %v2122, 2.1237322e-06
    %v2124 = vadd.f32 %v2123, 0.00028619796
    %v2125 = vmul.f32 %v2122, %v2124
    %v2126 = vadd.f32 %v2125, 0.0036580483
    %v2127 = vmul.f32 %v2122, %v2126
    %v2128 = vadd.f32 %v2127, 0.05243302
    %v2129 = vmul.f32 %v2122, %v2128
    %v2130 = vadd.f32 %v2129, 0.18741608
    %v2131 = vmul.f32 %v2122, %v2130
    %v2132 = vadd.f32 %v2131, 1.1283791
    %v2133 = vmul.f32 %v1520, %v2132
    %v2134 = vmul.f32 %v2122, 3.8918573e-05
    %v2135 = vadd.f32 %v2134, 0.001143296
    %v2136 = vmul.f32 %v2122, %v2135
    %v2137 = vadd.f32 %v2136, 0.014752088
    %v2138 = vmul.f32 %v2122, %v2137
    %v2139 = vadd.f32 %v2138, 0.112945676
    %v2140 = vmul.f32 %v2122, %v2139
    %v2141 = vadd.f32 %v2140, 0.4994258
    %v2142 = vmul.f32 %v2122, %v2141
    %v2143 = vadd.f32 %v2142, 1.0
    %v2144 = vrcp.pop %v2143
    %v2145 = vmul.f32 %v2143, %v2144
    %v2146 = vsub.f32 1.0, %v2145
    %v2147 = vmul.f32 %v2144, %v2146
    %v2148 = vadd.f32 %v2144, %v2147
    %vm2149 = vweird.f32 %v2143
    %vm2150 = vweird.f32 %v2144
    %vm2151 = vmor %vm2149, %vm2150
    %v2152 = vsel %vm2151, %v2144, %v2148
    %v2153 = vand.u32 2147483647, %v2143
    %vm2154 = vcmp.eq.f32.partialorder %v2153, 8.507059e+37
    %v2155 = vand.u32 %v2143, 2147483648
    %v2156 = vor.u32 1.1754944e-38, %v2155
    %v2157 = vsel %vm2154, %v2156, %v2152
    %v2158 = vmul.f32 %v2133, %v2157
    %v2159 = vmin.f32 %v2158, 1.0
    %v2160 = vmax.f32 %v2159, -1.0
    %v2161 = vadd.f32 %v1560, 1.0
    %v2162 = vadd.f32 %v1600, 1.0
    %v2163 = vadd.f32 %v1640, 1.0
    %v2164 = vadd.f32 %v1680, 1.0
    %v2165 = vadd.f32 %v1720, 1.0
    %v2166 = vadd.f32 %v1760, 1.0
    %v2167 = vadd.f32 %v1800, 1.0
    %v2168 = vadd.f32 %v1840, 1.0
    %v2169 = vadd.f32 %v1880, 1.0
    %v2170 = vadd.f32 %v1920, 1.0
    %v2171 = vadd.f32 %v1960, 1.0
    %v2172 = vadd.f32 %v2000, 1.0
    %v2173 = vadd.f32 %v2040, 1.0
    %v2174 = vadd.f32 %v2080, 1.0
    %v2175 = vadd.f32 %v2120, 1.0
    %v2176 = vadd.f32 %v2160, 1.0
    %v2177 = vmul.f32 %v1489, %v2161
    %v2178 = vmul.f32 %v1490, %v2162
    %v2179 = vmul.f32 %v1491, %v2163
    %v2180 = vmul.f32 %v1492, %v2164
    %v2181 = vmul.f32 %v1493, %v2165
    %v2182 = vmul.f32 %v1494, %v2166
    %v2183 = vmul.f32 %v1495, %v2167
    %v2184 = vmul.f32 %v1496, %v2168
    %v2185 = vmul.f32 %v1497, %v2169
    %v2186 = vmul.f32 %v1498, %v2170
    %v2187 = vmul.f32 %v1499, %v2171
    %v2188 = vmul.f32 %v1500, %v2172
    %v2189 = vmul.f32 %v1501, %v2173
    %v2190 = vmul.f32 %v1502, %v2174
    %v2191 = vmul.f32 %v1503, %v2175
    %v2192 = vmul.f32 %v1504, %v2176
    %vm2193 = vcmp.lt.s32.totalorder %v968, 16
    %v2194 = vsel %vm2193, 1, 0
    %v2195 = vcvt.s32.f32 %v2194
    %v2196 = vmul.f32 %v2177, %v2195
    %v2197 = vmul.f32 %v2178, %v2195
    %v2198 = vmul.f32 %v2179, %v2195
    %v2199 = vmul.f32 %v2180, %v2195
    %v2200 = vmul.f32 %v2181, %v2195
    %v2201 = vmul.f32 %v2182, %v2195
    %v2202 = vmul.f32 %v2183, %v2195
    %v2203 = vmul.f32 %v2184, %v2195
    %v2204 = vmul.f32 %v2185, %v2195
    %v2205 = vmul.f32 %v2186, %v2195
    %v2206 = vmul.f32 %v2187, %v2195
    %v2207 = vmul.f32 %v2188, %v2195
    %v2208 = vmul.f32 %v2189, %v2195
    %v2209 = vmul.f32 %v2190, %v2195
    %v2210 = vmul.f32 %v2191, %v2195
    %v2211 = vmul.f32 %v2192, %v2195
    %2212 = vadd.xlane.f32.xlu0 %v2196
    %v2213 = vpop.xlane.xlu0 %2212
    %2214 = vadd.xlane.f32.xlu0 %v2197
    %v2215 = vpop.xlane.xlu0 %2214
    %2216 = vadd.xlane.f32.xlu0 %v2198
    %v2217 = vpop.xlane.xlu0 %2216
    %2218 = vadd.xlane.f32.xlu0 %v2199
    %v2219 = vpop.xlane.xlu0 %2218
    %2220 = vadd.xlane.f32.xlu0 %v2200
    %v2221 = vpop.xlane.xlu0 %2220
    %2222 = vadd.xlane.f32.xlu0 %v2201
    %v2223 = vpop.xlane.xlu0 %2222
    %2224 = vadd.xlane.f32.xlu0 %v2202
    %v2225 = vpop.xlane.xlu0 %2224
    %2226 = vadd.xlane.f32.xlu0 %v2203
    %v2227 = vpop.xlane.xlu0 %2226
    %2228 = vadd.xlane.f32.xlu0 %v2204
    %v2229 = vpop.xlane.xlu0 %2228
    %2230 = vadd.xlane.f32.xlu0 %v2205
    %v2231 = vpop.xlane.xlu0 %2230
    %2232 = vadd.xlane.f32.xlu0 %v2206
    %v2233 = vpop.xlane.xlu0 %2232
    %2234 = vadd.xlane.f32.xlu0 %v2207
    %v2235 = vpop.xlane.xlu0 %2234
    %2236 = vadd.xlane.f32.xlu0 %v2208
    %v2237 = vpop.xlane.xlu0 %2236
    %2238 = vadd.xlane.f32.xlu0 %v2209
    %v2239 = vpop.xlane.xlu0 %2238
    %2240 = vadd.xlane.f32.xlu0 %v2210
    %v2241 = vpop.xlane.xlu0 %2240
    %2242 = vadd.xlane.f32.xlu0 %v2211
    %v2243 = vpop.xlane.xlu0 %2242
    %v2244 = vmul.f32 %v2213, 0.0625
    %v2245 = vmul.f32 %v2215, 0.0625
    %v2246 = vmul.f32 %v2217, 0.0625
    %v2247 = vmul.f32 %v2219, 0.0625
    %v2248 = vmul.f32 %v2221, 0.0625
    %v2249 = vmul.f32 %v2223, 0.0625
    %v2250 = vmul.f32 %v2225, 0.0625
    %v2251 = vmul.f32 %v2227, 0.0625
    %v2252 = vmul.f32 %v2229, 0.0625
    %v2253 = vmul.f32 %v2231, 0.0625
    %v2254 = vmul.f32 %v2233, 0.0625
    %v2255 = vmul.f32 %v2235, 0.0625
    %v2256 = vmul.f32 %v2237, 0.0625
    %v2257 = vmul.f32 %v2239, 0.0625
    %v2258 = vmul.f32 %v2241, 0.0625
    %v2259 = vmul.f32 %v2243, 0.0625
    %v2260 = vsub.f32 %v2177, %v2244
    %v2261 = vsub.f32 %v2178, %v2245
    %v2262 = vsub.f32 %v2179, %v2246
    %v2263 = vsub.f32 %v2180, %v2247
    %v2264 = vsub.f32 %v2181, %v2248
    %v2265 = vsub.f32 %v2182, %v2249
    %v2266 = vsub.f32 %v2183, %v2250
    %v2267 = vsub.f32 %v2184, %v2251
    %v2268 = vsub.f32 %v2185, %v2252
    %v2269 = vsub.f32 %v2186, %v2253
    %v2270 = vsub.f32 %v2187, %v2254
    %v2271 = vsub.f32 %v2188, %v2255
    %v2272 = vsub.f32 %v2189, %v2256
    %v2273 = vsub.f32 %v2190, %v2257
    %v2274 = vsub.f32 %v2191, %v2258
    %v2275 = vsub.f32 %v2192, %v2259
    %v2276 = vmul.f32 %v2260, %v2195
    %v2277 = vmul.f32 %v2261, %v2195
    %v2278 = vmul.f32 %v2262, %v2195
    %v2279 = vmul.f32 %v2263, %v2195
    %v2280 = vmul.f32 %v2264, %v2195
    %v2281 = vmul.f32 %v2265, %v2195
    %v2282 = vmul.f32 %v2266, %v2195
    %v2283 = vmul.f32 %v2267, %v2195
    %v2284 = vmul.f32 %v2268, %v2195
    %v2285 = vmul.f32 %v2269, %v2195
    %v2286 = vmul.f32 %v2270, %v2195
    %v2287 = vmul.f32 %v2271, %v2195
    %v2288 = vmul.f32 %v2272, %v2195
    %v2289 = vmul.f32 %v2273, %v2195
    %v2290 = vmul.f32 %v2274, %v2195
    %v2291 = vmul.f32 %v2275, %v2195
    %v2292 = vmul.f32 %v2276, %v2276
    %v2293 = vmul.f32 %v2277, %v2277
    %v2294 = vmul.f32 %v2278, %v2278
    %v2295 = vmul.f32 %v2279, %v2279
    %v2296 = vmul.f32 %v2280, %v2280
    %v2297 = vmul.f32 %v2281, %v2281
    %v2298 = vmul.f32 %v2282, %v2282
    %v2299 = vmul.f32 %v2283, %v2283
    %v2300 = vmul.f32 %v2284, %v2284
    %v2301 = vmul.f32 %v2285, %v2285
    %v2302 = vmul.f32 %v2286, %v2286
    %v2303 = vmul.f32 %v2287, %v2287
    %v2304 = vmul.f32 %v2288, %v2288
    %v2305 = vmul.f32 %v2289, %v2289
    %v2306 = vmul.f32 %v2290, %v2290
    %v2307 = vmul.f32 %v2291, %v2291
    %2308 = vadd.xlane.f32.xlu0 %v2292
    %v2309 = vpop.xlane.xlu0 %2308
    %2310 = vadd.xlane.f32.xlu0 %v2293
    %v2311 = vpop.xlane.xlu0 %2310
    %2312 = vadd.xlane.f32.xlu0 %v2294
    %v2313 = vpop.xlane.xlu0 %2312
    %2314 = vadd.xlane.f32.xlu0 %v2295
    %v2315 = vpop.xlane.xlu0 %2314
    %2316 = vadd.xlane.f32.xlu0 %v2296
    %v2317 = vpop.xlane.xlu0 %2316
    %2318 = vadd.xlane.f32.xlu0 %v2297
    %v2319 = vpop.xlane.xlu0 %2318
    %2320 = vadd.xlane.f32.xlu0 %v2298
    %v2321 = vpop.xlane.xlu0 %2320
    %2322 = vadd.xlane.f32.xlu0 %v2299
    %v2323 = vpop.xlane.xlu0 %2322
    %2324 = vadd.xlane.f32.xlu0 %v2300
    %v2325 = vpop.xlane.xlu0 %2324
    %2326 = vadd.xlane.f32.xlu0 %v2301
    %v2327 = vpop.xlane.xlu0 %2326
    %2328 = vadd.xlane.f32.xlu0 %v2302
    %v2329 = vpop.xlane.xlu0 %2328
    %2330 = vadd.xlane.f32.xlu0 %v2303
    %v2331 = vpop.xlane.xlu0 %2330
    %2332 = vadd.xlane.f32.xlu0 %v2304
    %v2333 = vpop.xlane.xlu0 %2332
    %2334 = vadd.xlane.f32.xlu0 %v2305
    %v2335 = vpop.xlane.xlu0 %2334
    %2336 = vadd.xlane.f32.xlu0 %v2306
    %v2337 = vpop.xlane.xlu0 %2336
    %2338 = vadd.xlane.f32.xlu0 %v2307
    %v2339 = vpop.xlane.xlu0 %2338
    %v2340 = vmul.f32 %v2309, 0.0625
    %v2341 = vmul.f32 %v2311, 0.0625
    %v2342 = vmul.f32 %v2313, 0.0625
    %v2343 = vmul.f32 %v2315, 0.0625
    %v2344 = vmul.f32 %v2317, 0.0625
    %v2345 = vmul.f32 %v2319, 0.0625
    %v2346 = vmul.f32 %v2321, 0.0625
    %v2347 = vmul.f32 %v2323, 0.0625
    %v2348 = vmul.f32 %v2325, 0.0625
    %v2349 = vmul.f32 %v2327, 0.0625
    %v2350 = vmul.f32 %v2329, 0.0625
    %v2351 = vmul.f32 %v2331, 0.0625
    %v2352 = vmul.f32 %v2333, 0.0625
    %v2353 = vmul.f32 %v2335, 0.0625
    %v2354 = vmul.f32 %v2337, 0.0625
    %v2355 = vmul.f32 %v2339, 0.0625
    %v2356 = vadd.f32 %v2340, 1e-05
    %v2357 = vadd.f32 %v2341, 1e-05
    %v2358 = vadd.f32 %v2342, 1e-05
    %v2359 = vadd.f32 %v2343, 1e-05
    %v2360 = vadd.f32 %v2344, 1e-05
    %v2361 = vadd.f32 %v2345, 1e-05
    %v2362 = vadd.f32 %v2346, 1e-05
    %v2363 = vadd.f32 %v2347, 1e-05
    %v2364 = vadd.f32 %v2348, 1e-05
    %v2365 = vadd.f32 %v2349, 1e-05
    %v2366 = vadd.f32 %v2350, 1e-05
    %v2367 = vadd.f32 %v2351, 1e-05
    %v2368 = vadd.f32 %v2352, 1e-05
    %v2369 = vadd.f32 %v2353, 1e-05
    %v2370 = vadd.f32 %v2354, 1e-05
    %v2371 = vadd.f32 %v2355, 1e-05
    %v2372 = vrsqrt.pop %v2356
    %v2373 = vmul.f32 %v2372, %v2356
    %v2374 = vmul.f32 %v2373, %v2372
    %v2375 = vmul.f32 0.5, %v2374
    %v2376 = vsub.f32 1.5, %v2375
    %v2377 = vmul.f32 %v2372, %v2376
    %vm2378 = vweird.f32 %v2356
    %vm2379 = vweird.f32 %v2372
    %vm2380 = vmor %vm2378, %vm2379
    %v2381 = vsel %vm2380, %v2372, %v2377
    %v2382 = vrsqrt.pop %v2357
    %v2383 = vmul.f32 %v2382, %v2357
    %v2384 = vmul.f32 %v2383, %v2382
    %v2385 = vmul.f32 0.5, %v2384
    %v2386 = vsub.f32 1.5, %v2385
    %v2387 = vmul.f32 %v2382, %v2386
    %vm2388 = vweird.f32 %v2357
    %vm2389 = vweird.f32 %v2382
    %vm2390 = vmor %vm2388, %vm2389
    %v2391 = vsel %vm2390, %v2382, %v2387
    %v2392 = vrsqrt.pop %v2358
    %v2393 = vmul.f32 %v2392, %v2358
    %v2394 = vmul.f32 %v2393, %v2392
    %v2395 = vmul.f32 0.5, %v2394
    %v2396 = vsub.f32 1.5, %v2395
    %v2397 = vmul.f32 %v2392, %v2396
    %vm2398 = vweird.f32 %v2358
    %vm2399 = vweird.f32 %v2392
    %vm2400 = vmor %vm2398, %vm2399
    %v2401 = vsel %vm2400, %v2392, %v2397
    %v2402 = vrsqrt.pop %v2359
    %v2403 = vmul.f32 %v2402, %v2359
    %v2404 = vmul.f32 %v2403, %v2402
    %v2405 = vmul.f32 0.5, %v2404
    %v2406 = vsub.f32 1.5, %v2405
    %v2407 = vmul.f32 %v2402, %v2406
    %vm2408 = vweird.f32 %v2359
    %vm2409 = vweird.f32 %v2402
    %vm2410 = vmor %vm2408, %vm2409
    %v2411 = vsel %vm2410, %v2402, %v2407
    %v2412 = vrsqrt.pop %v2360
    %v2413 = vmul.f32 %v2412, %v2360
    %v2414 = vmul.f32 %v2413, %v2412
    %v2415 = vmul.f32 0.5, %v2414
    %v2416 = vsub.f32 1.5, %v2415
    %v2417 = vmul.f32 %v2412, %v2416
    %vm2418 = vweird.f32 %v2360
    %vm2419 = vweird.f32 %v2412
    %vm2420 = vmor %vm2418, %vm2419
    %v2421 = vsel %vm2420, %v2412, %v2417
    %v2422 = vrsqrt.pop %v2361
    %v2423 = vmul.f32 %v2422, %v2361
    %v2424 = vmul.f32 %v2423, %v2422
    %v2425 = vmul.f32 0.5, %v2424
    %v2426 = vsub.f32 1.5, %v2425
    %v2427 = vmul.f32 %v2422, %v2426
    %vm2428 = vweird.f32 %v2361
    %vm2429 = vweird.f32 %v2422
    %vm2430 = vmor %vm2428, %vm2429
    %v2431 = vsel %vm2430, %v2422, %v2427
    %v2432 = vrsqrt.pop %v2362
    %v2433 = vmul.f32 %v2432, %v2362
    %v2434 = vmul.f32 %v2433, %v2432
    %v2435 = vmul.f32 0.5, %v2434
    %v2436 = vsub.f32 1.5, %v2435
    %v2437 = vmul.f32 %v2432, %v2436
    %vm2438 = vweird.f32 %v2362
    %vm2439 = vweird.f32 %v2432
    %vm2440 = vmor %vm2438, %vm2439
    %v2441 = vsel %vm2440, %v2432, %v2437
    %v2442 = vrsqrt.pop %v2363
    %v2443 = vmul.f32 %v2442, %v2363
    %v2444 = vmul.f32 %v2443, %v2442
    %v2445 = vmul.f32 0.5, %v2444
    %v2446 = vsub.f32 1.5, %v2445
    %v2447 = vmul.f32 %v2442, %v2446
    %vm2448 = vweird.f32 %v2363
    %vm2449 = vweird.f32 %v2442
    %vm2450 = vmor %vm2448, %vm2449
    %v2451 = vsel %vm2450, %v2442, %v2447
    %v2452 = vrsqrt.pop %v2364
    %v2453 = vmul.f32 %v2452, %v2364
    %v2454 = vmul.f32 %v2453, %v2452
    %v2455 = vmul.f32 0.5, %v2454
    %v2456 = vsub.f32 1.5, %v2455
    %v2457 = vmul.f32 %v2452, %v2456
    %vm2458 = vweird.f32 %v2364
    %vm2459 = vweird.f32 %v2452
    %vm2460 = vmor %vm2458, %vm2459
    %v2461 = vsel %vm2460, %v2452, %v2457
    %v2462 = vrsqrt.pop %v2365
    %v2463 = vmul.f32 %v2462, %v2365
    %v2464 = vmul.f32 %v2463, %v2462
    %v2465 = vmul.f32 0.5, %v2464
    %v2466 = vsub.f32 1.5, %v2465
    %v2467 = vmul.f32 %v2462, %v2466
    %vm2468 = vweird.f32 %v2365
    %vm2469 = vweird.f32 %v2462
    %vm2470 = vmor %vm2468, %vm2469
    %v2471 = vsel %vm2470, %v2462, %v2467
    %v2472 = vrsqrt.pop %v2366
    %v2473 = vmul.f32 %v2472, %v2366
    %v2474 = vmul.f32 %v2473, %v2472
    %v2475 = vmul.f32 0.5, %v2474
    %v2476 = vsub.f32 1.5, %v2475
    %v2477 = vmul.f32 %v2472, %v2476
    %vm2478 = vweird.f32 %v2366
    %vm2479 = vweird.f32 %v2472
    %vm2480 = vmor %vm2478, %vm2479
    %v2481 = vsel %vm2480, %v2472, %v2477
    %v2482 = vrsqrt.pop %v2367
    %v2483 = vmul.f32 %v2482, %v2367
    %v2484 = vmul.f32 %v2483, %v2482
    %v2485 = vmul.f32 0.5, %v2484
    %v2486 = vsub.f32 1.5, %v2485
    %v2487 = vmul.f32 %v2482, %v2486
    %vm2488 = vweird.f32 %v2367
    %vm2489 = vweird.f32 %v2482
    %vm2490 = vmor %vm2488, %vm2489
    %v2491 = vsel %vm2490, %v2482, %v2487
    %v2492 = vrsqrt.pop %v2368
    %v2493 = vmul.f32 %v2492, %v2368
    %v2494 = vmul.f32 %v2493, %v2492
    %v2495 = vmul.f32 0.5, %v2494
    %v2496 = vsub.f32 1.5, %v2495
    %v2497 = vmul.f32 %v2492, %v2496
    %vm2498 = vweird.f32 %v2368
    %vm2499 = vweird.f32 %v2492
    %vm2500 = vmor %vm2498, %vm2499
    %v2501 = vsel %vm2500, %v2492, %v2497
    %v2502 = vrsqrt.pop %v2369
    %v2503 = vmul.f32 %v2502, %v2369
    %v2504 = vmul.f32 %v2503, %v2502
    %v2505 = vmul.f32 0.5, %v2504
    %v2506 = vsub.f32 1.5, %v2505
    %v2507 = vmul.f32 %v2502, %v2506
    %vm2508 = vweird.f32 %v2369
    %vm2509 = vweird.f32 %v2502
    %vm2510 = vmor %vm2508, %vm2509
    %v2511 = vsel %vm2510, %v2502, %v2507
    %v2512 = vrsqrt.pop %v2370
    %v2513 = vmul.f32 %v2512, %v2370
    %v2514 = vmul.f32 %v2513, %v2512
    %v2515 = vmul.f32 0.5, %v2514
    %v2516 = vsub.f32 1.5, %v2515
    %v2517 = vmul.f32 %v2512, %v2516
    %vm2518 = vweird.f32 %v2370
    %vm2519 = vweird.f32 %v2512
    %vm2520 = vmor %vm2518, %vm2519
    %v2521 = vsel %vm2520, %v2512, %v2517
    %v2522 = vrsqrt.pop %v2371
    %v2523 = vmul.f32 %v2522, %v2371
    %v2524 = vmul.f32 %v2523, %v2522
    %v2525 = vmul.f32 0.5, %v2524
    %v2526 = vsub.f32 1.5, %v2525
    %v2527 = vmul.f32 %v2522, %v2526
    %vm2528 = vweird.f32 %v2371
    %vm2529 = vweird.f32 %v2522
    %vm2530 = vmor %vm2528, %vm2529
    %v2531 = vsel %vm2530, %v2522, %v2527
    %v2532 = vmul.f32 %v2260, %v2381
    %v2533 = vmul.f32 %v2261, %v2391
    %v2534 = vmul.f32 %v2262, %v2401
    %v2535 = vmul.f32 %v2263, %v2411
    %v2536 = vmul.f32 %v2264, %v2421
    %v2537 = vmul.f32 %v2265, %v2431
    %v2538 = vmul.f32 %v2266, %v2441
    %v2539 = vmul.f32 %v2267, %v2451
    %v2540 = vmul.f32 %v2268, %v2461
    %v2541 = vmul.f32 %v2269, %v2471
    %v2542 = vmul.f32 %v2270, %v2481
    %v2543 = vmul.f32 %v2271, %v2491
    %v2544 = vmul.f32 %v2272, %v2501
    %v2545 = vmul.f32 %v2273, %v2511
    %v2546 = vmul.f32 %v2274, %v2521
    %v2547 = vmul.f32 %v2275, %v2531
    %v2549 = vperm.slane %v1379, 0
    %v2551 = vmul.f32 %v2532, %v2549
    %v2552 = vmul.f32 %v2533, %v2549
    %v2553 = vmul.f32 %v2534, %v2549
    %v2554 = vmul.f32 %v2535, %v2549
    %v2555 = vmul.f32 %v2536, %v2549
    %v2556 = vmul.f32 %v2537, %v2549
    %v2557 = vmul.f32 %v2538, %v2549
    %v2558 = vmul.f32 %v2539, %v2549
    %v2559 = vmul.f32 %v2540, %v2549
    %v2560 = vmul.f32 %v2541, %v2549
    %v2561 = vmul.f32 %v2542, %v2549
    %v2562 = vmul.f32 %v2543, %v2549
    %v2563 = vmul.f32 %v2544, %v2549
    %v2564 = vmul.f32 %v2545, %v2549
    %v2565 = vmul.f32 %v2546, %v2549
    %v2566 = vmul.f32 %v2547, %v2549
    %v2568 = vperm.slane %v1380, 0
    %v2570 = vadd.f32 %v2551, %v2568
    %v2571 = vadd.f32 %v2552, %v2568
    %v2572 = vadd.f32 %v2553, %v2568
    %v2573 = vadd.f32 %v2554, %v2568
    %v2574 = vadd.f32 %v2555, %v2568
    %v2575 = vadd.f32 %v2556, %v2568
    %v2576 = vadd.f32 %v2557, %v2568
    %v2577 = vadd.f32 %v2558, %v2568
    %v2578 = vadd.f32 %v2559, %v2568
    %v2579 = vadd.f32 %v2560, %v2568
    %v2580 = vadd.f32 %v2561, %v2568
    %v2581 = vadd.f32 %v2562, %v2568
    %v2582 = vadd.f32 %v2563, %v2568
    %v2583 = vadd.f32 %v2564, %v2568
    %v2584 = vadd.f32 %v2565, %v2568
    %v2585 = vadd.f32 %v2566, %v2568
    %2586 = vst [vmem:[#allocation8] sm:$0xff] %v2570
    %2587 = vst [vmem:[#allocation8 + $0x8] sm:$0xff] %v2571
    %2588 = vst [vmem:[#allocation8 + $0x10] sm:$0xff] %v2572
    %2589 = vst [vmem:[#allocation8 + $0x18] sm:$0xff] %v2573
    %2590 = vst [vmem:[#allocation8 + $0x20] sm:$0xff] %v2574
    %2591 = vst [vmem:[#allocation8 + $0x28] sm:$0xff] %v2575
    %2592 = vst [vmem:[#allocation8 + $0x30] sm:$0xff] %v2576
    %2593 = vst [vmem:[#allocation8 + $0x38] sm:$0xff] %v2577
    %2594 = vst [vmem:[#allocation8 + $0x40] sm:$0xff] %v2578
    %2595 = vst [vmem:[#allocation8 + $0x48] sm:$0xff] %v2579
    %2596 = vst [vmem:[#allocation8 + $0x50] sm:$0xff] %v2580
    %2597 = vst [vmem:[#allocation8 + $0x58] sm:$0xff] %v2581
    %2598 = vst [vmem:[#allocation8 + $0x60] sm:$0xff] %v2582
    %2599 = vst [vmem:[#allocation8 + $0x68] sm:$0xff] %v2583
    %2600 = vst [vmem:[#allocation8 + $0x70] sm:$0xff] %v2584
    %2601 = vst [vmem:[#allocation8 + $0x78] sm:$0xff] %v2585
    // Predicated region
    $region50: #{tpu_custom_call.1} parent=1 // pred_check
      _
    $region51: #{tpu_custom_call.1} parent=1 // pred_check_branch
      %2603 = sbr.rel (0) target = $region53
    $region52: #{tpu_custom_call.1} parent=1 // pred_region
      %2605 = vsyncadd [#allocation4], 0
      %s2606 = sshll.u32 [#allocation8], 4
      %s2607 = int_to_ptr.vmem [resolvable:$true] %s2606
      %s2608 = sshll.u32 %s9, 4
      %s2609 = int_to_ptr.hbm [resolvable:$true] %s2608
      %2614 = dma.vmem_to_hbm [thread:$0]  %s2607, 2048, %s2609, [#allocation4], 128, 128, 8
    $region53: #{tpu_custom_call.1} parent=1 // pred_fallthru
      _
    // Predicated region
    $region54: #{tpu_custom_call.1} parent=1 // pred_check
      _
    $region55: #{tpu_custom_call.1} parent=1 // pred_check_branch
      %2616 = sbr.rel (0) target = $region57
    $region56: #{tpu_custom_call.1} parent=1 // pred_region
      %2618 = dma.done [#allocation4], 2048
    $region57: #{tpu_custom_call.1} parent=1 // pred_fallthru
      _
    %2619 = vsyncpa [#allocation3], 1
    %2620 = vsyncpa [#allocation6], 1
    %2621 = vsyncpa [#allocation4], 1

</llo_original>
